<compile_context>
chip_gen: v6e
topology: v6e:2x2x1
jax: 0.10.0
libtpu: 0.0.40
codegen_flags: <defaults>
</compile_context>

<pallas_src>
import math
import jax
import jax.numpy as jnp
from jax.experimental import pallas as pl
from jax.experimental.pallas import tpu as pltpu

NUM_HEADS = 4
DIM = 128
HEAD_DIM = DIM // NUM_HEADS   # 32
D_FF = 2048
FF_CHUNK = 512
N_FF_CHUNKS = D_FF // FF_CHUNK


def pose_query_kernel(x_ref, wv_ref, bv_ref, wfu_ref, bfu_ref, wf2_ref, bf2_ref,
                      out_ref):
    f32 = jnp.float32
    bf16 = jnp.bfloat16

    # In-kernel cast of the activation tile (cheap VPU pass, avoids a separate
    # wrapper-side XLA cast over x).
    x = x_ref[...].astype(bf16)                                     # (TB, 128)

    # Residual path: attention context == v exactly (softmax over the single
    # key position is 1, so the q/k/score path is dead code).
    v = jnp.dot(x, wv_ref[...], preferred_element_type=f32) + bv_ref[...]   # (TB,128) f32

    # feedforward_0 with the v-projection folded in: Wfu = Wv@Wf1 (host, f32).
    # Chunked over D_FF so the (TB, D_FF) f32 intermediate never materializes
    # and VPU bias/relu/cast work interleaves with the MXU matmuls.
    ff = jnp.zeros_like(v)                                          # (TB,128) f32
    for c in range(N_FF_CHUNKS):
        lo = c * FF_CHUNK
        hi = lo + FF_CHUNK
        h = (jnp.dot(x, wfu_ref[:, lo:hi], preferred_element_type=f32)
             + bfu_ref[:, lo:hi])                                   # (TB, 512) f32
        h = jnp.maximum(h, 0.0).astype(bf16)
        ff = ff + jnp.dot(h, wf2_ref[lo:hi, :], preferred_element_type=f32)

    # residual add; layer_norm_1 hits its N == 1 identity branch.
    out_ref[...] = (v + ff + bf2_ref[...]).astype(out_ref.dtype)


def _round_up(a, m):
    return -(-a // m) * m


def pose_query_pallas(x, pose, p, *, tb=512):
    """x: (B, C, X, Y) with C == 128 and X*Y == 1; pose: (B, 2)."""
    del pose  # pose only feeds the q path, which is exactly dead for the output
    B, C, X, Y = x.shape
    N = X * Y
    assert C == DIM and N == 1, "PoseQuery's reshape of q_linear(pose) requires X*Y == 1"

    f32, bf16 = jnp.float32, jnp.bfloat16

    # flatten(2).transpose(1,2) with N==1  ->  (B, C) token rows (free reshape).
    x2d = x.reshape(B, C)

    # --- Batch tiling: pad only to a sublane multiple of 8; pick TB so it
    #     (nearly) divides the padded batch.  Keep >= 2 (even) grid steps when
    #     the batch allows it so the "parallel" axis shards across v7x's 2 TCs.
    b8 = _round_up(B, 8)
    n_tiles = -(-b8 // tb)
    if b8 >= 16:
        n_tiles = max(n_tiles, 2)
        n_tiles += n_tiles % 2
    TB = _round_up(-(-b8 // n_tiles), 8)
    B_pad = TB * n_tiles
    if B_pad != B:
        x2d = jnp.pad(x2d, ((0, B_pad - B), (0, 0)))

    # --- Weight prep (host side, f32 math, bf16 storage on the MXU path).
    wv_f32 = p["wv"].astype(f32)
    wf1_f32 = p["wf1"].astype(f32)
    # relu((x@Wv + bv)@Wf1 + bf1) == relu(x@(Wv@Wf1) + (bv@Wf1 + bf1))
    w_fused = (wv_f32 @ wf1_f32).astype(bf16)                        # (128, 2048)
    b_fused = (p["bv"].astype(f32) @ wf1_f32
               + p["bf1"].astype(f32)).reshape(1, -1)                # (1, 2048) f32
    wv = wv_f32.astype(bf16)                                         # (128, 128)
    wf2 = p["wf2"].astype(bf16)                                      # (2048, 128)
    bv = p["bv"].reshape(1, -1).astype(f32)
    bf2 = p["bf2"].reshape(1, -1).astype(f32)

    const2 = lambda i: (0, 0)
    flops = 2 * B_pad * (C * C + C * D_FF + D_FF * C)
    bytes_accessed = (x2d.size * x2d.dtype.itemsize                  # x in
                      + (wv.size + w_fused.size + wf2.size) * 2      # bf16 weights
                      + (bv.size + b_fused.size + bf2.size) * 4      # f32 biases
                      + B_pad * C * 4)                               # f32 out

    out2d = pl.pallas_call(
        pose_query_kernel,
        grid=(n_tiles,),
        in_specs=[
            pl.BlockSpec((TB, C), lambda i: (i, 0)),   # x tile
            pl.BlockSpec(wv.shape, const2),
            pl.BlockSpec(bv.shape, const2),
            pl.BlockSpec(w_fused.shape, const2),
            pl.BlockSpec(b_fused.shape, const2),
            pl.BlockSpec(wf2.shape, const2),
            pl.BlockSpec(bf2.shape, const2),
        ],
        out_specs=pl.BlockSpec((TB, C), lambda i: (i, 0)),
        out_shape=jax.ShapeDtypeStruct((B_pad, C), f32),
        compiler_params=pltpu.CompilerParams(
            dimension_semantics=("parallel",),
            vmem_limit_bytes=32 * 1024 * 1024),
        cost_estimate=pl.CostEstimate(flops=flops, transcendentals=0,
                                      bytes_accessed=bytes_accessed),
    )(x2d, wv, bv, w_fused, b_fused, wf2, bf2)

    out2d = out2d[:B]
    # atten_res.view(B, X, Y, C).permute(0, 3, 1, 2)
    return out2d.reshape(B, X, Y, C).transpose(0, 3, 1, 2)


# ---------------- pure-JAX reference (mirrors the PyTorch code, f32) ----------------
def pose_query_ref(x, pose, p):
    B, C, X, Y = x.shape
    N = X * Y
    xs = x.reshape(B, C, N).transpose(0, 2, 1)                    # (B, N, C)
    q = pose.reshape(B, 1, 2) @ p["wq1"] + p["bq1"]
    q = q @ p["wq2"] + p["bq2"]                                   # (B, 1, 128)
    q = q.reshape(B, N, NUM_HEADS, HEAD_DIM).transpose(0, 2, 1, 3)
    k = (xs @ p["wk"] + p["bk"]).reshape(B, N, NUM_HEADS, HEAD_DIM).transpose(0, 2, 1, 3)
    v = (xs @ p["wv"] + p["bv"]).reshape(B, N, NUM_HEADS, HEAD_DIM).transpose(0, 2, 1, 3)
    scores = (q / math.sqrt(HEAD_DIM)) @ k.transpose(0, 1, 3, 2)
    probs = jax.nn.softmax(scores, axis=-1)
    ctx = (probs @ v).transpose(0, 2, 1, 3).reshape(B, N, C)
    ff = jnp.maximum(ctx @ p["wf1"] + p["bf1"], 0.0) @ p["wf2"] + p["bf2"]
    out = ctx + ff                                                # layer_norm_1 identity (N==1)
    return out.reshape(B, X, Y, C).transpose(0, 3, 1, 2)


def init_params(key):
    # deterministic synthetic init; weights stored as (in, out) so y = x @ W + b
    ks = jax.random.split(key, 12)

    def u(k, shape, fan_in):
        bound = 1.0 / math.sqrt(fan_in)
        return jax.random.uniform(k, shape, jnp.float32, -bound, bound)

    return {
        "wq1": u(ks[0], (2, 32), 2),      "bq1": u(ks[1], (32,), 2),
        "wq2": u(ks[2], (32, DIM), 32),   "bq2": u(ks[3], (DIM,), 32),
        "wk":  u(ks[4], (DIM, DIM), DIM), "bk":  u(ks[5], (DIM,), DIM),
        "wv":  u(ks[6], (DIM, DIM), DIM), "bv":  u(ks[7], (DIM,), DIM),
        "wf1": u(ks[8], (DIM, D_FF), DIM),  "bf1": u(ks[9], (D_FF,), DIM),
        "wf2": u(ks[10], (D_FF, DIM), D_FF), "bf2": u(ks[11], (DIM,), D_FF),
    }


if __name__ == "__main__":
    key = jax.random.PRNGKey(0)
    kx, kp, kw, kx2, kp2 = jax.random.split(key, 5)
    params = init_params(kw)

    # small deployment-like case (B < 8 gets padded to one 8-row tile)
    B, C, X, Y = 2, 128, 1, 1   # X*Y must be 1; C must be 128 (dim of k/v Linear)
    x = jax.random.normal(kx, (B, C, X, Y), jnp.float32)
    pose = jax.random.normal(kp, (B, 2), jnp.float32)
    out = jax.block_until_ready(pose_query_pallas(x, pose, params))
    ref = pose_query_ref(x, pose, params)
    assert out.shape == (B, C, X, Y), out.shape
    assert bool(jnp.all(jnp.isfinite(out)))
    # bf16 matmul inputs with f32 accumulation -> loosened tolerance vs f32 ref
    assert bool(jnp.allclose(out, ref, rtol=2e-2, atol=2e-2)), "mismatch vs reference (small B)"

    # larger case exercising the fixed padding (300 -> 2 tiles of 152, not 2x256)
    B2 = 300
    x2 = jax.random.normal(kx2, (B2, C, X, Y), jnp.float32)
    pose2 = jax.random.normal(kp2, (B2, 2), jnp.float32)
    out2 = jax.block_until_ready(pose_query_pallas(x2, pose2, params))
    ref2 = pose_query_ref(x2, pose2, params)
    assert out2.shape == (B2, C, X, Y), out2.shape
    assert bool(jnp.all(jnp.isfinite(out2)))
    assert bool(jnp.allclose(out2, ref2, rtol=2e-2, atol=2e-2)), "mismatch vs reference (large B)"

    print("KERNEL_OK")
</pallas_src>

<mosaic_0001>
module attributes {stable_mosaic.version = 11 : i64} {
  func.func @pose_query_kernel(%arg0: i32, %arg1: memref<8x128xf32, #tpu.memory_space<vmem>>, %arg2: memref<128x128xbf16, #tpu.memory_space<vmem>>, %arg3: memref<1x128xf32, #tpu.memory_space<vmem>>, %arg4: memref<128x2048xbf16, #tpu.memory_space<vmem>>, %arg5: memref<1x2048xf32, #tpu.memory_space<vmem>>, %arg6: memref<2048x128xbf16, #tpu.memory_space<vmem>>, %arg7: memref<1x128xf32, #tpu.memory_space<vmem>>, %arg8: memref<8x128xf32, #tpu.memory_space<vmem>>) attributes {dimension_semantics = [#tpu.dimension_semantics<parallel>], iteration_bounds = array<i64: 1>, scalar_prefetch = 0 : i64, scratch_operands = 0 : i64, tpu.core_type = #tpu.core_type<tc>, window_params = [{transform_indices = @transform_0, window_bounds = array<i64: 8, 128>}, {pipeline_mode = #tpu.pipeline_mode<synchronous>, transform_indices = @transform_1, window_bounds = array<i64: 128, 128>}, {pipeline_mode = #tpu.pipeline_mode<synchronous>, transform_indices = @transform_2, window_bounds = array<i64: 1, 128>}, {pipeline_mode = #tpu.pipeline_mode<synchronous>, transform_indices = @transform_3, window_bounds = array<i64: 128, 2048>}, {pipeline_mode = #tpu.pipeline_mode<synchronous>, transform_indices = @transform_4, window_bounds = array<i64: 1, 2048>}, {pipeline_mode = #tpu.pipeline_mode<synchronous>, transform_indices = @transform_5, window_bounds = array<i64: 2048, 128>}, {pipeline_mode = #tpu.pipeline_mode<synchronous>, transform_indices = @transform_6, window_bounds = array<i64: 1, 128>}, {transform_indices = @transform_7, window_bounds = array<i64: 8, 128>}]} {
    %c0 = arith.constant 0 : index
    %c0_0 = arith.constant 0 : index
    %0 = vector.load %arg1[%c0, %c0_0] : memref<8x128xf32, #tpu.memory_space<vmem>>, vector<8x128xf32>
    %1 = arith.truncf %0 : vector<8x128xf32> to vector<8x128xbf16>
    %c0_1 = arith.constant 0 : index
    %c0_2 = arith.constant 0 : index
    %2 = vector.load %arg2[%c0_1, %c0_2] : memref<128x128xbf16, #tpu.memory_space<vmem>>, vector<128x128xbf16>
    %cst = arith.constant dense<0.000000e+00> : vector<8x128xf32>
    %3 = tpu.matmul %1, %2, %cst {dimension_numbers = #tpu.dot_dimension_numbers<[1], [0], [0], [1], [0, 0, 1, 1], [], []>} : vector<8x128xbf16>, vector<128x128xbf16>, vector<8x128xf32> -> vector<8x128xf32>
    %c0_3 = arith.constant 0 : index
    %c0_4 = arith.constant 0 : index
    %4 = vector.load %arg3[%c0_3, %c0_4] : memref<1x128xf32, #tpu.memory_space<vmem>>, vector<1x128xf32>
    %5 = vector.broadcast %4 : vector<1x128xf32> to vector<8x128xf32>
    %6 = arith.addf %3, %5 : vector<8x128xf32>
    %cst_5 = arith.constant 0.000000e+00 : f32
    %7 = vector.broadcast %cst_5 : f32 to vector<8x128xf32>
    %c0_6 = arith.constant 0 : index
    %c0_7 = arith.constant 0 : index
    %8 = vector.load %arg4[%c0_6, %c0_7] : memref<128x2048xbf16, #tpu.memory_space<vmem>>, vector<128x512xbf16>
    %cst_8 = arith.constant dense<0.000000e+00> : vector<8x512xf32>
    %9 = tpu.matmul %1, %8, %cst_8 {dimension_numbers = #tpu.dot_dimension_numbers<[1], [0], [0], [1], [0, 0, 1, 1], [], []>} : vector<8x128xbf16>, vector<128x512xbf16>, vector<8x512xf32> -> vector<8x512xf32>
    %c0_9 = arith.constant 0 : index
    %c0_10 = arith.constant 0 : index
    %10 = vector.load %arg5[%c0_9, %c0_10] : memref<1x2048xf32, #tpu.memory_space<vmem>>, vector<1x512xf32>
    %11 = vector.broadcast %10 : vector<1x512xf32> to vector<8x512xf32>
    %12 = arith.addf %9, %11 : vector<8x512xf32>
    %cst_11 = arith.constant 0.000000e+00 : f32
    %13 = vector.broadcast %cst_11 : f32 to vector<8x512xf32>
    %14 = arith.maximumf %12, %13 : vector<8x512xf32>
    %15 = arith.truncf %14 : vector<8x512xf32> to vector<8x512xbf16>
    %c0_12 = arith.constant 0 : index
    %c0_13 = arith.constant 0 : index
    %16 = vector.load %arg6[%c0_12, %c0_13] : memref<2048x128xbf16, #tpu.memory_space<vmem>>, vector<512x128xbf16>
    %cst_14 = arith.constant dense<0.000000e+00> : vector<8x128xf32>
    %17 = tpu.matmul %15, %16, %cst_14 {dimension_numbers = #tpu.dot_dimension_numbers<[1], [0], [0], [1], [0, 0, 1, 1], [], []>} : vector<8x512xbf16>, vector<512x128xbf16>, vector<8x128xf32> -> vector<8x128xf32>
    %18 = arith.addf %7, %17 : vector<8x128xf32>
    %c0_15 = arith.constant 0 : index
    %c512 = arith.constant 512 : index
    %19 = vector.load %arg4[%c0_15, %c512] : memref<128x2048xbf16, #tpu.memory_space<vmem>>, vector<128x512xbf16>
    %cst_16 = arith.constant dense<0.000000e+00> : vector<8x512xf32>
    %20 = tpu.matmul %1, %19, %cst_16 {dimension_numbers = #tpu.dot_dimension_numbers<[1], [0], [0], [1], [0, 0, 1, 1], [], []>} : vector<8x128xbf16>, vector<128x512xbf16>, vector<8x512xf32> -> vector<8x512xf32>
    %c0_17 = arith.constant 0 : index
    %c512_18 = arith.constant 512 : index
    %21 = vector.load %arg5[%c0_17, %c512_18] : memref<1x2048xf32, #tpu.memory_space<vmem>>, vector<1x512xf32>
    %22 = vector.broadcast %21 : vector<1x512xf32> to vector<8x512xf32>
    %23 = arith.addf %20, %22 : vector<8x512xf32>
    %cst_19 = arith.constant 0.000000e+00 : f32
    %24 = vector.broadcast %cst_19 : f32 to vector<8x512xf32>
    %25 = arith.maximumf %23, %24 : vector<8x512xf32>
    %26 = arith.truncf %25 : vector<8x512xf32> to vector<8x512xbf16>
    %c512_20 = arith.constant 512 : index
    %c0_21 = arith.constant 0 : index
    %27 = vector.load %arg6[%c512_20, %c0_21] : memref<2048x128xbf16, #tpu.memory_space<vmem>>, vector<512x128xbf16>
    %cst_22 = arith.constant dense<0.000000e+00> : vector<8x128xf32>
    %28 = tpu.matmul %26, %27, %cst_22 {dimension_numbers = #tpu.dot_dimension_numbers<[1], [0], [0], [1], [0, 0, 1, 1], [], []>} : vector<8x512xbf16>, vector<512x128xbf16>, vector<8x128xf32> -> vector<8x128xf32>
    %29 = arith.addf %18, %28 : vector<8x128xf32>
    %c0_23 = arith.constant 0 : index
    %c1024 = arith.constant 1024 : index
    %30 = vector.load %arg4[%c0_23, %c1024] : memref<128x2048xbf16, #tpu.memory_space<vmem>>, vector<128x512xbf16>
    %cst_24 = arith.constant dense<0.000000e+00> : vector<8x512xf32>
    %31 = tpu.matmul %1, %30, %cst_24 {dimension_numbers = #tpu.dot_dimension_numbers<[1], [0], [0], [1], [0, 0, 1, 1], [], []>} : vector<8x128xbf16>, vector<128x512xbf16>, vector<8x512xf32> -> vector<8x512xf32>
    %c0_25 = arith.constant 0 : index
    %c1024_26 = arith.constant 1024 : index
    %32 = vector.load %arg5[%c0_25, %c1024_26] : memref<1x2048xf32, #tpu.memory_space<vmem>>, vector<1x512xf32>
    %33 = vector.broadcast %32 : vector<1x512xf32> to vector<8x512xf32>
    %34 = arith.addf %31, %33 : vector<8x512xf32>
    %cst_27 = arith.constant 0.000000e+00 : f32
    %35 = vector.broadcast %cst_27 : f32 to vector<8x512xf32>
    %36 = arith.maximumf %34, %35 : vector<8x512xf32>
    %37 = arith.truncf %36 : vector<8x512xf32> to vector<8x512xbf16>
    %c1024_28 = arith.constant 1024 : index
    %c0_29 = arith.constant 0 : index
    %38 = vector.load %arg6[%c1024_28, %c0_29] : memref<2048x128xbf16, #tpu.memory_space<vmem>>, vector<512x128xbf16>
    %cst_30 = arith.constant dense<0.000000e+00> : vector<8x128xf32>
    %39 = tpu.matmul %37, %38, %cst_30 {dimension_numbers = #tpu.dot_dimension_numbers<[1], [0], [0], [1], [0, 0, 1, 1], [], []>} : vector<8x512xbf16>, vector<512x128xbf16>, vector<8x128xf32> -> vector<8x128xf32>
    %40 = arith.addf %29, %39 : vector<8x128xf32>
    %c0_31 = arith.constant 0 : index
    %c1536 = arith.constant 1536 : index
    %41 = vector.load %arg4[%c0_31, %c1536] : memref<128x2048xbf16, #tpu.memory_space<vmem>>, vector<128x512xbf16>
    %cst_32 = arith.constant dense<0.000000e+00> : vector<8x512xf32>
    %42 = tpu.matmul %1, %41, %cst_32 {dimension_numbers = #tpu.dot_dimension_numbers<[1], [0], [0], [1], [0, 0, 1, 1], [], []>} : vector<8x128xbf16>, vector<128x512xbf16>, vector<8x512xf32> -> vector<8x512xf32>
    %c0_33 = arith.constant 0 : index
    %c1536_34 = arith.constant 1536 : index
    %43 = vector.load %arg5[%c0_33, %c1536_34] : memref<1x2048xf32, #tpu.memory_space<vmem>>, vector<1x512xf32>
    %44 = vector.broadcast %43 : vector<1x512xf32> to vector<8x512xf32>
    %45 = arith.addf %42, %44 : vector<8x512xf32>
    %cst_35 = arith.constant 0.000000e+00 : f32
    %46 = vector.broadcast %cst_35 : f32 to vector<8x512xf32>
    %47 = arith.maximumf %45, %46 : vector<8x512xf32>
    %48 = arith.truncf %47 : vector<8x512xf32> to vector<8x512xbf16>
    %c1536_36 = arith.constant 1536 : index
    %c0_37 = arith.constant 0 : index
    %49 = vector.load %arg6[%c1536_36, %c0_37] : memref<2048x128xbf16, #tpu.memory_space<vmem>>, vector<512x128xbf16>
    %cst_38 = arith.constant dense<0.000000e+00> : vector<8x128xf32>
    %50 = tpu.matmul %48, %49, %cst_38 {dimension_numbers = #tpu.dot_dimension_numbers<[1], [0], [0], [1], [0, 0, 1, 1], [], []>} : vector<8x512xbf16>, vector<512x128xbf16>, vector<8x128xf32> -> vector<8x128xf32>
    %51 = arith.addf %40, %50 : vector<8x128xf32>
    %52 = arith.addf %6, %51 : vector<8x128xf32>
    %c0_39 = arith.constant 0 : index
    %c0_40 = arith.constant 0 : index
    %53 = vector.load %arg7[%c0_39, %c0_40] : memref<1x128xf32, #tpu.memory_space<vmem>>, vector<1x128xf32>
    %54 = vector.broadcast %53 : vector<1x128xf32> to vector<8x128xf32>
    %55 = arith.addf %52, %54 : vector<8x128xf32>
    %c0_41 = arith.constant 0 : index
    %c0_42 = arith.constant 0 : index
    %56 = vector.load %arg8[%c0_41, %c0_42] : memref<8x128xf32, #tpu.memory_space<vmem>>, vector<8x128xf32>
    tpu.vector_store %arg8[%c0_41, %c0_42], %55 {strides = array<i32>} : memref<8x128xf32, #tpu.memory_space<vmem>>, vector<8x128xf32>,
    return
  }
  func.func @transform_0(%arg0: i32) -> (i32, i32) {
    %c0_i32 = arith.constant 0 : i32
    %c0_i32_0 = arith.constant 0 : i32
    return %arg0, %c0_i32 : i32, i32
  }
  func.func @transform_1(%arg0: i32) -> (i32, i32) {
    %c0_i32 = arith.constant 0 : i32
    %c0_i32_0 = arith.constant 0 : i32
    %c0_i32_1 = arith.constant 0 : i32
    return %c0_i32, %c0_i32_0 : i32, i32
  }
  func.func @transform_2(%arg0: i32) -> (i32, i32) {
    %c0_i32 = arith.constant 0 : i32
    %c0_i32_0 = arith.constant 0 : i32
    %c0_i32_1 = arith.constant 0 : i32
    return %c0_i32, %c0_i32_0 : i32, i32
  }
  func.func @transform_3(%arg0: i32) -> (i32, i32) {
    %c0_i32 = arith.constant 0 : i32
    %c0_i32_0 = arith.constant 0 : i32
    %c0_i32_1 = arith.constant 0 : i32
    return %c0_i32, %c0_i32_0 : i32, i32
  }
  func.func @transform_4(%arg0: i32) -> (i32, i32) {
    %c0_i32 = arith.constant 0 : i32
    %c0_i32_0 = arith.constant 0 : i32
    %c0_i32_1 = arith.constant 0 : i32
    return %c0_i32, %c0_i32_0 : i32, i32
  }
  func.func @transform_5(%arg0: i32) -> (i32, i32) {
    %c0_i32 = arith.constant 0 : i32
    %c0_i32_0 = arith.constant 0 : i32
    %c0_i32_1 = arith.constant 0 : i32
    return %c0_i32, %c0_i32_0 : i32, i32
  }
  func.func @transform_6(%arg0: i32) -> (i32, i32) {
    %c0_i32 = arith.constant 0 : i32
    %c0_i32_0 = arith.constant 0 : i32
    %c0_i32_1 = arith.constant 0 : i32
    return %c0_i32, %c0_i32_0 : i32, i32
  }
  func.func @transform_7(%arg0: i32) -> (i32, i32) {
    %c0_i32 = arith.constant 0 : i32
    %c0_i32_0 = arith.constant 0 : i32
    return %arg0, %c0_i32 : i32, i32
  }
}

</mosaic_0001>

<llo_original>
// kernel: tpu_custom_call.1
$region0: #{tpu_custom_call.1}
  #allocation0 [shape = 'u32[]', space=smem, size = 0x4, offset = 0x4, fixed_abs, tag = 'smem constant byte address 0x4 - core index']
  #allocation1 [shape = 'u32[144,128]{1,0:T(1,128)}', space=vmem, size = 0x12000, scoped, tag = 'internal scratch']
  %s0 = inlined_call_operand.hbm [shape: f32[8,128], index: 0, kind: input, shape index: {}]
  %s1 = inlined_call_operand.hbm [shape: bf16[128,128], index: 1, kind: input, shape index: {}]
  %s2 = inlined_call_operand.vmem [shape: f32[1,128], index: 2, kind: input, shape index: {}]
  %s3 = inlined_call_operand.hbm [shape: bf16[128,2048], index: 3, kind: input, shape index: {}]
  %s4 = inlined_call_operand.hbm [shape: f32[1,2048], index: 4, kind: input, shape index: {}]
  %s5 = inlined_call_operand.hbm [shape: bf16[2048,128], index: 5, kind: input, shape index: {}]
  %s6 = inlined_call_operand.vmem [shape: f32[1,128], index: 6, kind: input, shape index: {}]
  %s7 = inlined_call_operand.hbm [shape: f32[8,128], index: 7, kind: output, shape index: {}]
  %s8 = sld [smem:[#allocation0]]
  $region58: #{tpu_custom_call.1} parent=0
    _
  %s10 = ssub.s32 1, %s8
  %s11 = scalar_select 0, %s10, %s8
  $region1: #{tpu_custom_call.1} parent=0
    #allocation2 [shape = 'u8[4096]{0}', space=vmem, size = 0x1000, scoped, tag = 'input window, operand 0, single buffered']
    #allocation3 [shape = 's32[1]{0}', space=sflag, size = 0x4, scoped, tag = 'scoped memory for tpu_custom_call.1']
    #allocation4 [shape = 's32[1]{0}', space=sflag, size = 0x4, scoped, tag = 'scoped memory for tpu_custom_call.1']
    #allocation5 [shape = 'u8[32768]{0}', space=vmem, size = 0x8000, scoped, tag = 'input window, operand 1, single buffered']
    #allocation6 [shape = 's32[1]{0}', space=sflag, size = 0x4, scoped, tag = 'scoped memory for tpu_custom_call.1']
    #allocation7 [shape = 'u8[524288]{0}', space=vmem, size = 0x80000, scoped, tag = 'input window, operand 3, single buffered']
    #allocation8 [shape = 'u8[8192]{0}', space=vmem, size = 0x2000, scoped, tag = 'input window, operand 4, single buffered']
    #allocation9 [shape = 's32[1]{0}', space=sflag, size = 0x4, scoped, tag = 'scoped memory for tpu_custom_call.1']
    #allocation10 [shape = 'u8[524288]{0}', space=vmem, size = 0x80000, scoped, tag = 'input window, operand 5, single buffered']
    #allocation11 [shape = 'u8[4096]{0}', space=vmem, size = 0x1000, scoped, tag = 'output window, operand 0, single buffered']
    %12 = vsyncpa [#allocation3], 0
    %13 = vsyncpa [#allocation6], 0
    %14 = vsyncpa [#allocation9], 0
    %15 = vsyncpa [#allocation4], 0
    // Predicated region
    $region2: #{tpu_custom_call.1} parent=1 // pred_check
      _
    $region3: #{tpu_custom_call.1} parent=1 // pred_check_branch
      %17 = sbr.rel (0) target = $region5
    $region4: #{tpu_custom_call.1} parent=1 // pred_region
      %s19 = ssub.s32 128, 128
      %20 = vsyncadd [#allocation3], %s19
      %s22 = sshll.u32 [#allocation2], 4
      %s23 = int_to_ptr.vmem [resolvable:$true] %s22
      %25 = dma.hbm_to_vmem [thread:$0]  %s0, 128, %s23, [#allocation3]
    $region5: #{tpu_custom_call.1} parent=1 // pred_fallthru
      _
    // Predicated region
    $region6: #{tpu_custom_call.1} parent=1 // pred_check
      _
    $region7: #{tpu_custom_call.1} parent=1 // pred_check_branch
      %27 = sbr.rel (0) target = $region9
    $region8: #{tpu_custom_call.1} parent=1 // pred_region
      %s29 = ssub.s32 1024, 1024
      %30 = vsyncadd [#allocation6], %s29
      %s31 = sshll.u32 [#allocation5], 4
      %s32 = int_to_ptr.vmem [resolvable:$true] %s31
      %37 = dma.hbm_to_vmem [thread:$0]  %s1, 1024, %s32, [#allocation6], 64, 64, 4
    $region9: #{tpu_custom_call.1} parent=1 // pred_fallthru
      _
    // Predicated region
    $region10: #{tpu_custom_call.1} parent=1 // pred_check
      _
    $region11: #{tpu_custom_call.1} parent=1 // pred_check_branch
      %39 = sbr.rel (0) target = $region13
    $region12: #{tpu_custom_call.1} parent=1 // pred_region
      _
    $region13: #{tpu_custom_call.1} parent=1 // pred_fallthru
      _
    // Predicated region
    $region14: #{tpu_custom_call.1} parent=1 // pred_check
      _
    $region15: #{tpu_custom_call.1} parent=1 // pred_check_branch
      %41 = sbr.rel (0) target = $region17
    $region16: #{tpu_custom_call.1} parent=1 // pred_region
      %s43 = ssub.s32 16384, 16384
      %44 = vsyncadd [#allocation6], %s43
      %s45 = sshll.u32 [#allocation7], 4
      %s46 = int_to_ptr.vmem [resolvable:$true] %s45
      %51 = dma.hbm_to_vmem [thread:$0]  %s3, 16384, %s46, [#allocation6], 1024, 1024, 64
    $region17: #{tpu_custom_call.1} parent=1 // pred_fallthru
      _
    // Predicated region
    $region18: #{tpu_custom_call.1} parent=1 // pred_check
      _
    $region19: #{tpu_custom_call.1} parent=1 // pred_check_branch
      %53 = sbr.rel (0) target = $region21
    $region20: #{tpu_custom_call.1} parent=1 // pred_region
      %s55 = ssub.s32 256, 256
      %56 = vsyncadd [#allocation9], %s55
      %s58 = sshll.u32 [#allocation8], 4
      %s59 = int_to_ptr.vmem [resolvable:$true] %s58
      %61 = dma.hbm_to_vmem [thread:$0]  %s4, 256, %s59, [#allocation9]
    $region21: #{tpu_custom_call.1} parent=1 // pred_fallthru
      _
    // Predicated region
    $region22: #{tpu_custom_call.1} parent=1 // pred_check
      _
    $region23: #{tpu_custom_call.1} parent=1 // pred_check_branch
      %63 = sbr.rel (0) target = $region25
    $region24: #{tpu_custom_call.1} parent=1 // pred_region
      %s65 = ssub.s32 16384, 16384
      %66 = vsyncadd [#allocation9], %s65
      %s67 = sshll.u32 [#allocation10], 4
      %s68 = int_to_ptr.vmem [resolvable:$true] %s67
      %73 = dma.hbm_to_vmem [thread:$0]  %s5, 16384, %s68, [#allocation9], 64, 64, 4
    $region25: #{tpu_custom_call.1} parent=1 // pred_fallthru
      _
    // Predicated region
    $region26: #{tpu_custom_call.1} parent=1 // pred_check
      _
    $region27: #{tpu_custom_call.1} parent=1 // pred_check_branch
      %75 = sbr.rel (0) target = $region29
    $region28: #{tpu_custom_call.1} parent=1 // pred_region
      _
    $region29: #{tpu_custom_call.1} parent=1 // pred_fallthru
      _
    // Predicated region
    $region30: #{tpu_custom_call.1} parent=1 // pred_check
      _
    $region31: #{tpu_custom_call.1} parent=1 // pred_check_branch
      %77 = sbr.rel (0) target = $region33
    $region32: #{tpu_custom_call.1} parent=1 // pred_region
      %78 = dma.done [#allocation3], 128
    $region33: #{tpu_custom_call.1} parent=1 // pred_fallthru
      _
    // Predicated region
    $region34: #{tpu_custom_call.1} parent=1 // pred_check
      _
    $region35: #{tpu_custom_call.1} parent=1 // pred_check_branch
      %80 = sbr.rel (0) target = $region37
    $region36: #{tpu_custom_call.1} parent=1 // pred_region
      %81 = dma.done [#allocation6], 1024
    $region37: #{tpu_custom_call.1} parent=1 // pred_fallthru
      _
    // Predicated region
    $region38: #{tpu_custom_call.1} parent=1 // pred_check
      _
    $region39: #{tpu_custom_call.1} parent=1 // pred_check_branch
      %83 = sbr.rel (0) target = $region41
    $region40: #{tpu_custom_call.1} parent=1 // pred_region
      %84 = dma.done [#allocation6], 16384
    $region41: #{tpu_custom_call.1} parent=1 // pred_fallthru
      _
    // Predicated region
    $region42: #{tpu_custom_call.1} parent=1 // pred_check
      _
    $region43: #{tpu_custom_call.1} parent=1 // pred_check_branch
      %86 = sbr.rel (0) target = $region45
    $region44: #{tpu_custom_call.1} parent=1 // pred_region
      %87 = dma.done [#allocation9], 256
    $region45: #{tpu_custom_call.1} parent=1 // pred_fallthru
      _
    // Predicated region
    $region46: #{tpu_custom_call.1} parent=1 // pred_check
      _
    $region47: #{tpu_custom_call.1} parent=1 // pred_check_branch
      %89 = sbr.rel (0) target = $region49
    $region48: #{tpu_custom_call.1} parent=1 // pred_region
      %90 = dma.done [#allocation9], 16384
    $region49: #{tpu_custom_call.1} parent=1 // pred_fallthru
      _
    %v92 = vld [vmem:[#allocation2] sm:$0xff]
    %v93 = vpack.c.bf16 %v92, %v92
    %v94 = vld [vmem:[#allocation5] sm:$0xf]
    %v95 = vld [vmem:[#allocation5 + $0x4] sm:$0xf]
    %v96 = vld [vmem:[#allocation5 + $0x8] sm:$0xf]
    %v97 = vld [vmem:[#allocation5 + $0xc] sm:$0xf]
    %v98 = vld [vmem:[#allocation5 + $0x10] sm:$0xf]
    %v99 = vld [vmem:[#allocation5 + $0x14] sm:$0xf]
    %v100 = vld [vmem:[#allocation5 + $0x18] sm:$0xf]
    %v101 = vld [vmem:[#allocation5 + $0x1c] sm:$0xf]
    %v102 = vld [vmem:[#allocation5 + $0x20] sm:$0xf]
    %v103 = vld [vmem:[#allocation5 + $0x24] sm:$0xf]
    %v104 = vld [vmem:[#allocation5 + $0x28] sm:$0xf]
    %v105 = vld [vmem:[#allocation5 + $0x2c] sm:$0xf]
    %v106 = vld [vmem:[#allocation5 + $0x30] sm:$0xf]
    %v107 = vld [vmem:[#allocation5 + $0x34] sm:$0xf]
    %v108 = vld [vmem:[#allocation5 + $0x38] sm:$0xf]
    %v109 = vld [vmem:[#allocation5 + $0x3c] sm:$0xf]
    %v110 = vld [vmem:[%s2] sm:$0x1]
    %v112 = vlaneseq
    %v113 = vshrl.u32 %v112, 7
    %v114 = vsub.s32 0, %v113
    %v115 = vrot.slane %v110, %v114
    %v133 = vunpack.c.l.b16 %v94
    %v134 = vunpack.c.l.b16 %v95
    %v135 = vunpack.c.l.b16 %v96
    %v136 = vunpack.c.l.b16 %v97
    %v137 = vunpack.c.l.b16 %v98
    %v138 = vunpack.c.l.b16 %v99
    %v139 = vunpack.c.l.b16 %v100
    %v140 = vunpack.c.l.b16 %v101
    %v141 = vunpack.c.l.b16 %v102
    %v142 = vunpack.c.l.b16 %v103
    %v143 = vunpack.c.l.b16 %v104
    %v144 = vunpack.c.l.b16 %v105
    %v145 = vunpack.c.l.b16 %v106
    %v146 = vunpack.c.l.b16 %v107
    %v147 = vunpack.c.l.b16 %v108
    %v148 = vunpack.c.l.b16 %v109
    %v149 = vpack.c.b16 %v134, %v133
    %v150 = vpack.c.b16 %v136, %v135
    %v151 = vpack.c.b16 %v138, %v137
    %v152 = vpack.c.b16 %v140, %v139
    %v153 = vpack.c.b16 %v142, %v141
    %v154 = vpack.c.b16 %v144, %v143
    %v155 = vpack.c.b16 %v146, %v145
    %v156 = vpack.c.b16 %v148, %v147
    %165 = vmatprep.subr.bf16.mxu0 0
    %166 = vmatpush1.bf16.msra.mxu0 %v156
    %167 = vmatprep.subr.bf16.mxu0 0
    %168 = vmatpush1.bf16.msra.mxu0 %v155
    %169 = vmatprep.subr.bf16.mxu0 0
    %170 = vmatpush1.bf16.msra.mxu0 %v154
    %171 = vmatprep.subr.bf16.mxu0 0
    %172 = vmatpush1.bf16.msra.mxu0 %v153
    %173 = vmatprep.subr.bf16.mxu0 0
    %174 = vmatpush1.bf16.msra.mxu0 %v152
    %175 = vmatprep.subr.bf16.mxu0 0
    %176 = vmatpush1.bf16.msra.mxu0 %v151
    %177 = vmatprep.subr.bf16.mxu0 0
    %178 = vmatpush1.bf16.msra.mxu0 %v150
    %179 = vmatprep.subr.bf16.mxu0 0
    %180 = vmatpush1.bf16.msra.mxu0 %v149
    %181 = vmatprep.subr.bf16.mxu0 0
    %182 = vmatpush2.bf16.msra.mxu0 0
    %183 = vmatprep.subr.bf16.mxu0 0
    %184 = vmatpush2.bf16.msra.mxu0 0
    %185 = vmatprep.subr.bf16.mxu0 0
    %186 = vmatpush2.bf16.msra.mxu0 0
    %187 = vmatprep.subr.bf16.mxu0 0
    %188 = vmatpush2.bf16.msra.mxu0 0
    %189 = vmatprep.subr.bf16.mxu0 0
    %190 = vmatpush2.bf16.msra.mxu0 0
    %191 = vmatprep.subr.bf16.mxu0 0
    %192 = vmatpush2.bf16.msra.mxu0 0
    %193 = vmatprep.subr.bf16.mxu0 0
    %194 = vmatpush2.bf16.msra.mxu0 0
    %195 = vmatprep.subr.bf16.mxu0 0
    %196 = vmatpush2.bf16.msra.mxu0 0
    %197 = vmatprep.mubr.bf16.mxu0 0
    %198 = vmatmul.mubr.bf16.gmra.mxu0 %v93
    %v199 = vpop.f32.mrf.mxu0
    %v200 = vadd.f32 %v115, %v199
    %v201 = vpop.f32.mrf.mxu0
    %v202 = vpop.f32.mrf.mxu0
    %v203 = vpop.f32.mrf.mxu0
    %204 = vdwg.mxu0
    %v205 = vld [vmem:[#allocation7] sm:$0xff]
    %v206 = vld [vmem:[#allocation7 + $0x8] sm:$0xff]
    %v207 = vld [vmem:[#allocation7 + $0x40] sm:$0xff]
    %v208 = vld [vmem:[#allocation7 + $0x48] sm:$0xff]
    %v209 = vld [vmem:[#allocation7 + $0x80] sm:$0xff]
    %v210 = vld [vmem:[#allocation7 + $0x88] sm:$0xff]
    %v211 = vld [vmem:[#allocation7 + $0xc0] sm:$0xff]
    %v212 = vld [vmem:[#allocation7 + $0xc8] sm:$0xff]
    %v213 = vld [vmem:[#allocation7 + $0x100] sm:$0xff]
    %v214 = vld [vmem:[#allocation7 + $0x108] sm:$0xff]
    %v215 = vld [vmem:[#allocation7 + $0x140] sm:$0xff]
    %v216 = vld [vmem:[#allocation7 + $0x148] sm:$0xff]
    %v217 = vld [vmem:[#allocation7 + $0x180] sm:$0xff]
    %v218 = vld [vmem:[#allocation7 + $0x188] sm:$0xff]
    %v219 = vld [vmem:[#allocation7 + $0x1c0] sm:$0xff]
    %v220 = vld [vmem:[#allocation7 + $0x1c8] sm:$0xff]
    %v221 = vld [vmem:[#allocation7 + $0x200] sm:$0xff]
    %v222 = vld [vmem:[#allocation7 + $0x208] sm:$0xff]
    %v223 = vld [vmem:[#allocation7 + $0x240] sm:$0xff]
    %v224 = vld [vmem:[#allocation7 + $0x248] sm:$0xff]
    %v225 = vld [vmem:[#allocation7 + $0x280] sm:$0xff]
    %v226 = vld [vmem:[#allocation7 + $0x288] sm:$0xff]
    %v227 = vld [vmem:[#allocation7 + $0x2c0] sm:$0xff]
    %v228 = vld [vmem:[#allocation7 + $0x2c8] sm:$0xff]
    %v229 = vld [vmem:[#allocation7 + $0x300] sm:$0xff]
    %v230 = vld [vmem:[#allocation7 + $0x308] sm:$0xff]
    %v231 = vld [vmem:[#allocation7 + $0x340] sm:$0xff]
    %v232 = vld [vmem:[#allocation7 + $0x348] sm:$0xff]
    %v233 = vld [vmem:[#allocation7 + $0x380] sm:$0xff]
    %v234 = vld [vmem:[#allocation7 + $0x388] sm:$0xff]
    %v235 = vld [vmem:[#allocation7 + $0x3c0] sm:$0xff]
    %v236 = vld [vmem:[#allocation7 + $0x3c8] sm:$0xff]
    %v237 = vld [vmem:[#allocation8] sm:$0xf]
    %v239 = vlaneseq
    %v240 = vshrl.u32 %v239, 7
    %v241 = vsub.s32 0, %v240
    %v242 = vrot.slane %v237, %v241
    %v243 = vlaneseq
    %v244 = vshrl.u32 %v243, 7
    %v245 = vsub.s32 1, %v244
    %v246 = vrot.slane %v237, %v245
    %v247 = vlaneseq
    %v248 = vshrl.u32 %v247, 7
    %v249 = vsub.s32 2, %v248
    %v250 = vrot.slane %v237, %v249
    %v251 = vlaneseq
    %v252 = vshrl.u32 %v251, 7
    %v253 = vsub.s32 3, %v252
    %v254 = vrot.slane %v237, %v253
    %v291 = vunpack.c.l.b16 %v205
    %v292 = vunpack.c.h.b16 %v205
    %v293 = vunpack.c.l.b16 %v206
    %v294 = vunpack.c.h.b16 %v206
    %v295 = vunpack.c.l.b16 %v207
    %v296 = vunpack.c.h.b16 %v207
    %v297 = vunpack.c.l.b16 %v208
    %v298 = vunpack.c.h.b16 %v208
    %v299 = vunpack.c.l.b16 %v209
    %v300 = vunpack.c.h.b16 %v209
    %v301 = vunpack.c.l.b16 %v210
    %v302 = vunpack.c.h.b16 %v210
    %v303 = vunpack.c.l.b16 %v211
    %v304 = vunpack.c.h.b16 %v211
    %v305 = vunpack.c.l.b16 %v212
    %v306 = vunpack.c.h.b16 %v212
    %v307 = vunpack.c.l.b16 %v213
    %v308 = vunpack.c.h.b16 %v213
    %v309 = vunpack.c.l.b16 %v214
    %v310 = vunpack.c.h.b16 %v214
    %v311 = vunpack.c.l.b16 %v215
    %v312 = vunpack.c.h.b16 %v215
    %v313 = vunpack.c.l.b16 %v216
    %v314 = vunpack.c.h.b16 %v216
    %v315 = vunpack.c.l.b16 %v217
    %v316 = vunpack.c.h.b16 %v217
    %v317 = vunpack.c.l.b16 %v218
    %v318 = vunpack.c.h.b16 %v218
    %v319 = vunpack.c.l.b16 %v219
    %v320 = vunpack.c.h.b16 %v219
    %v321 = vunpack.c.l.b16 %v220
    %v322 = vunpack.c.h.b16 %v220
    %v323 = vunpack.c.l.b16 %v221
    %v324 = vunpack.c.h.b16 %v221
    %v325 = vunpack.c.l.b16 %v222
    %v326 = vunpack.c.h.b16 %v222
    %v327 = vunpack.c.l.b16 %v223
    %v328 = vunpack.c.h.b16 %v223
    %v329 = vunpack.c.l.b16 %v224
    %v330 = vunpack.c.h.b16 %v224
    %v331 = vunpack.c.l.b16 %v225
    %v332 = vunpack.c.h.b16 %v225
    %v333 = vunpack.c.l.b16 %v226
    %v334 = vunpack.c.h.b16 %v226
    %v335 = vunpack.c.l.b16 %v227
    %v336 = vunpack.c.h.b16 %v227
    %v337 = vunpack.c.l.b16 %v228
    %v338 = vunpack.c.h.b16 %v228
    %v339 = vunpack.c.l.b16 %v229
    %v340 = vunpack.c.h.b16 %v229
    %v341 = vunpack.c.l.b16 %v230
    %v342 = vunpack.c.h.b16 %v230
    %v343 = vunpack.c.l.b16 %v231
    %v344 = vunpack.c.h.b16 %v231
    %v345 = vunpack.c.l.b16 %v232
    %v346 = vunpack.c.h.b16 %v232
    %v347 = vunpack.c.l.b16 %v233
    %v348 = vunpack.c.h.b16 %v233
    %v349 = vunpack.c.l.b16 %v234
    %v350 = vunpack.c.h.b16 %v234
    %v351 = vunpack.c.l.b16 %v235
    %v352 = vunpack.c.h.b16 %v235
    %v353 = vunpack.c.l.b16 %v236
    %v354 = vunpack.c.h.b16 %v236
    %v355 = vpack.c.b16 %v295, %v291
    %v356 = vpack.c.b16 %v296, %v292
    %v357 = vpack.c.b16 %v297, %v293
    %v358 = vpack.c.b16 %v298, %v294
    %v359 = vpack.c.b16 %v303, %v299
    %v360 = vpack.c.b16 %v304, %v300
    %v361 = vpack.c.b16 %v305, %v301
    %v362 = vpack.c.b16 %v306, %v302
    %v363 = vpack.c.b16 %v311, %v307
    %v364 = vpack.c.b16 %v312, %v308
    %v365 = vpack.c.b16 %v313, %v309
    %v366 = vpack.c.b16 %v314, %v310
    %v367 = vpack.c.b16 %v319, %v315
    %v368 = vpack.c.b16 %v320, %v316
    %v369 = vpack.c.b16 %v321, %v317
    %v370 = vpack.c.b16 %v322, %v318
    %v371 = vpack.c.b16 %v327, %v323
    %v372 = vpack.c.b16 %v328, %v324
    %v373 = vpack.c.b16 %v329, %v325
    %v374 = vpack.c.b16 %v330, %v326
    %v375 = vpack.c.b16 %v335, %v331
    %v376 = vpack.c.b16 %v336, %v332
    %v377 = vpack.c.b16 %v337, %v333
    %v378 = vpack.c.b16 %v338, %v334
    %v379 = vpack.c.b16 %v343, %v339
    %v380 = vpack.c.b16 %v344, %v340
    %v381 = vpack.c.b16 %v345, %v341
    %v382 = vpack.c.b16 %v346, %v342
    %v383 = vpack.c.b16 %v351, %v347
    %v384 = vpack.c.b16 %v352, %v348
    %v385 = vpack.c.b16 %v353, %v349
    %v386 = vpack.c.b16 %v354, %v350
    %419 = vmatprep.subr.bf16.mxu0 %v384
    %420 = vmatpush1.bf16.msra.mxu0 %v383
    %421 = vmatprep.subr.bf16.mxu0 %v380
    %422 = vmatpush1.bf16.msra.mxu0 %v379
    %423 = vmatprep.subr.bf16.mxu0 %v376
    %424 = vmatpush1.bf16.msra.mxu0 %v375
    %425 = vmatprep.subr.bf16.mxu0 %v372
    %426 = vmatpush1.bf16.msra.mxu0 %v371
    %427 = vmatprep.subr.bf16.mxu0 %v368
    %428 = vmatpush1.bf16.msra.mxu0 %v367
    %429 = vmatprep.subr.bf16.mxu0 %v364
    %430 = vmatpush1.bf16.msra.mxu0 %v363
    %431 = vmatprep.subr.bf16.mxu0 %v360
    %432 = vmatpush1.bf16.msra.mxu0 %v359
    %433 = vmatprep.subr.bf16.mxu0 %v356
    %434 = vmatpush1.bf16.msra.mxu0 %v355
    %435 = vmatprep.subr.bf16.mxu0 0
    %436 = vmatpush2.bf16.msra.mxu0 0
    %437 = vmatprep.subr.bf16.mxu0 0
    %438 = vmatpush2.bf16.msra.mxu0 0
    %439 = vmatprep.subr.bf16.mxu0 0
    %440 = vmatpush2.bf16.msra.mxu0 0
    %441 = vmatprep.subr.bf16.mxu0 0
    %442 = vmatpush2.bf16.msra.mxu0 0
    %443 = vmatprep.subr.bf16.mxu0 0
    %444 = vmatpush2.bf16.msra.mxu0 0
    %445 = vmatprep.subr.bf16.mxu0 0
    %446 = vmatpush2.bf16.msra.mxu0 0
    %447 = vmatprep.subr.bf16.mxu0 0
    %448 = vmatpush2.bf16.msra.mxu0 0
    %449 = vmatprep.subr.bf16.mxu0 0
    %450 = vmatpush2.bf16.msra.mxu0 0
    %451 = vmatprep.mubr.bf16.mxu0 0
    %452 = vmatmul.mubr.bf16.gmra.mxu0 %v93
    %v453 = vpop.f32.mrf.mxu0
    %v454 = vadd.f32 %v242, %v453
    %v455 = vpop.f32.mrf.mxu0
    %v456 = vadd.f32 %v246, %v455
    %v457 = vpop.f32.mrf.mxu0
    %v458 = vpop.f32.mrf.mxu0
    %459 = vdwg.mxu0
    %460 = vmatprep.subr.bf16.mxu0 %v386
    %461 = vmatpush1.bf16.msra.mxu0 %v385
    %462 = vmatprep.subr.bf16.mxu0 %v382
    %463 = vmatpush1.bf16.msra.mxu0 %v381
    %464 = vmatprep.subr.bf16.mxu0 %v378
    %465 = vmatpush1.bf16.msra.mxu0 %v377
    %466 = vmatprep.subr.bf16.mxu0 %v374
    %467 = vmatpush1.bf16.msra.mxu0 %v373
    %468 = vmatprep.subr.bf16.mxu0 %v370
    %469 = vmatpush1.bf16.msra.mxu0 %v369
    %470 = vmatprep.subr.bf16.mxu0 %v366
    %471 = vmatpush1.bf16.msra.mxu0 %v365
    %472 = vmatprep.subr.bf16.mxu0 %v362
    %473 = vmatpush1.bf16.msra.mxu0 %v361
    %474 = vmatprep.subr.bf16.mxu0 %v358
    %475 = vmatpush1.bf16.msra.mxu0 %v357
    %476 = vmatprep.subr.bf16.mxu0 0
    %477 = vmatpush2.bf16.msra.mxu0 0
    %478 = vmatprep.subr.bf16.mxu0 0
    %479 = vmatpush2.bf16.msra.mxu0 0
    %480 = vmatprep.subr.bf16.mxu0 0
    %481 = vmatpush2.bf16.msra.mxu0 0
    %482 = vmatprep.subr.bf16.mxu0 0
    %483 = vmatpush2.bf16.msra.mxu0 0
    %484 = vmatprep.subr.bf16.mxu0 0
    %485 = vmatpush2.bf16.msra.mxu0 0
    %486 = vmatprep.subr.bf16.mxu0 0
    %487 = vmatpush2.bf16.msra.mxu0 0
    %488 = vmatprep.subr.bf16.mxu0 0
    %489 = vmatpush2.bf16.msra.mxu0 0
    %490 = vmatprep.subr.bf16.mxu0 0
    %491 = vmatpush2.bf16.msra.mxu0 0
    %492 = vmatprep.mubr.bf16.mxu0 0
    %493 = vmatmul.mubr.bf16.gmra.mxu0 %v93
    %v494 = vpop.f32.mrf.mxu0
    %v495 = vadd.f32 %v250, %v494
    %v496 = vpop.f32.mrf.mxu0
    %v497 = vadd.f32 %v254, %v496
    %v498 = vpop.f32.mrf.mxu0
    %v499 = vpop.f32.mrf.mxu0
    %500 = vdwg.mxu0
    %v501 = vmax.f32 %v454, 0.0
    %v502 = vmax.f32 %v456, 0.0
    %v503 = vmax.f32 %v495, 0.0
    %v504 = vmax.f32 %v497, 0.0
    %v505 = vpack.c.bf16 %v501, %v501
    %v506 = vpack.c.bf16 %v502, %v502
    %v507 = vpack.c.bf16 %v503, %v503
    %v508 = vpack.c.bf16 %v504, %v504
    %v509 = vld [vmem:[#allocation10] sm:$0xf]
    %v510 = vld [vmem:[#allocation10 + $0x4] sm:$0xf]
    %v511 = vld [vmem:[#allocation10 + $0x8] sm:$0xf]
    %v512 = vld [vmem:[#allocation10 + $0xc] sm:$0xf]
    %v513 = vld [vmem:[#allocation10 + $0x10] sm:$0xf]
    %v514 = vld [vmem:[#allocation10 + $0x14] sm:$0xf]
    %v515 = vld [vmem:[#allocation10 + $0x18] sm:$0xf]
    %v516 = vld [vmem:[#allocation10 + $0x1c] sm:$0xf]
    %v517 = vld [vmem:[#allocation10 + $0x20] sm:$0xf]
    %v518 = vld [vmem:[#allocation10 + $0x24] sm:$0xf]
    %v519 = vld [vmem:[#allocation10 + $0x28] sm:$0xf]
    %v520 = vld [vmem:[#allocation10 + $0x2c] sm:$0xf]
    %v521 = vld [vmem:[#allocation10 + $0x30] sm:$0xf]
    %v522 = vld [vmem:[#allocation10 + $0x34] sm:$0xf]
    %v523 = vld [vmem:[#allocation10 + $0x38] sm:$0xf]
    %v524 = vld [vmem:[#allocation10 + $0x3c] sm:$0xf]
    %v525 = vld [vmem:[#allocation10 + $0x40] sm:$0xf]
    %v526 = vld [vmem:[#allocation10 + $0x44] sm:$0xf]
    %v527 = vld [vmem:[#allocation10 + $0x48] sm:$0xf]
    %v528 = vld [vmem:[#allocation10 + $0x4c] sm:$0xf]
    %v529 = vld [vmem:[#allocation10 + $0x50] sm:$0xf]
    %v530 = vld [vmem:[#allocation10 + $0x54] sm:$0xf]
    %v531 = vld [vmem:[#allocation10 + $0x58] sm:$0xf]
    %v532 = vld [vmem:[#allocation10 + $0x5c] sm:$0xf]
    %v533 = vld [vmem:[#allocation10 + $0x60] sm:$0xf]
    %v534 = vld [vmem:[#allocation10 + $0x64] sm:$0xf]
    %v535 = vld [vmem:[#allocation10 + $0x68] sm:$0xf]
    %v536 = vld [vmem:[#allocation10 + $0x6c] sm:$0xf]
    %v537 = vld [vmem:[#allocation10 + $0x70] sm:$0xf]
    %v538 = vld [vmem:[#allocation10 + $0x74] sm:$0xf]
    %v539 = vld [vmem:[#allocation10 + $0x78] sm:$0xf]
    %v540 = vld [vmem:[#allocation10 + $0x7c] sm:$0xf]
    %v541 = vld [vmem:[#allocation10 + $0x80] sm:$0xf]
    %v542 = vld [vmem:[#allocation10 + $0x84] sm:$0xf]
    %v543 = vld [vmem:[#allocation10 + $0x88] sm:$0xf]
    %v544 = vld [vmem:[#allocation10 + $0x8c] sm:$0xf]
    %v545 = vld [vmem:[#allocation10 + $0x90] sm:$0xf]
    %v546 = vld [vmem:[#allocation10 + $0x94] sm:$0xf]
    %v547 = vld [vmem:[#allocation10 + $0x98] sm:$0xf]
    %v548 = vld [vmem:[#allocation10 + $0x9c] sm:$0xf]
    %v549 = vld [vmem:[#allocation10 + $0xa0] sm:$0xf]
    %v550 = vld [vmem:[#allocation10 + $0xa4] sm:$0xf]
    %v551 = vld [vmem:[#allocation10 + $0xa8] sm:$0xf]
    %v552 = vld [vmem:[#allocation10 + $0xac] sm:$0xf]
    %v553 = vld [vmem:[#allocation10 + $0xb0] sm:$0xf]
    %v554 = vld [vmem:[#allocation10 + $0xb4] sm:$0xf]
    %v555 = vld [vmem:[#allocation10 + $0xb8] sm:$0xf]
    %v556 = vld [vmem:[#allocation10 + $0xbc] sm:$0xf]
    %v557 = vld [vmem:[#allocation10 + $0xc0] sm:$0xf]
    %v558 = vld [vmem:[#allocation10 + $0xc4] sm:$0xf]
    %v559 = vld [vmem:[#allocation10 + $0xc8] sm:$0xf]
    %v560 = vld [vmem:[#allocation10 + $0xcc] sm:$0xf]
    %v561 = vld [vmem:[#allocation10 + $0xd0] sm:$0xf]
    %v562 = vld [vmem:[#allocation10 + $0xd4] sm:$0xf]
    %v563 = vld [vmem:[#allocation10 + $0xd8] sm:$0xf]
    %v564 = vld [vmem:[#allocation10 + $0xdc] sm:$0xf]
    %v565 = vld [vmem:[#allocation10 + $0xe0] sm:$0xf]
    %v566 = vld [vmem:[#allocation10 + $0xe4] sm:$0xf]
    %v567 = vld [vmem:[#allocation10 + $0xe8] sm:$0xf]
    %v568 = vld [vmem:[#allocation10 + $0xec] sm:$0xf]
    %v569 = vld [vmem:[#allocation10 + $0xf0] sm:$0xf]
    %v570 = vld [vmem:[#allocation10 + $0xf4] sm:$0xf]
    %v571 = vld [vmem:[#allocation10 + $0xf8] sm:$0xf]
    %v572 = vld [vmem:[#allocation10 + $0xfc] sm:$0xf]
    %v573 = vld [vmem:[#allocation7 + $0x10] sm:$0xff]
    %v574 = vld [vmem:[#allocation7 + $0x18] sm:$0xff]
    %v575 = vld [vmem:[#allocation7 + $0x50] sm:$0xff]
    %v576 = vld [vmem:[#allocation7 + $0x58] sm:$0xff]
    %v577 = vld [vmem:[#allocation7 + $0x90] sm:$0xff]
    %v578 = vld [vmem:[#allocation7 + $0x98] sm:$0xff]
    %v579 = vld [vmem:[#allocation7 + $0xd0] sm:$0xff]
    %v580 = vld [vmem:[#allocation7 + $0xd8] sm:$0xff]
    %v581 = vld [vmem:[#allocation7 + $0x110] sm:$0xff]
    %v582 = vld [vmem:[#allocation7 + $0x118] sm:$0xff]
    %v583 = vld [vmem:[#allocation7 + $0x150] sm:$0xff]
    %v584 = vld [vmem:[#allocation7 + $0x158] sm:$0xff]
    %v585 = vld [vmem:[#allocation7 + $0x190] sm:$0xff]
    %v586 = vld [vmem:[#allocation7 + $0x198] sm:$0xff]
    %v587 = vld [vmem:[#allocation7 + $0x1d0] sm:$0xff]
    %v588 = vld [vmem:[#allocation7 + $0x1d8] sm:$0xff]
    %v589 = vld [vmem:[#allocation7 + $0x210] sm:$0xff]
    %v590 = vld [vmem:[#allocation7 + $0x218] sm:$0xff]
    %v591 = vld [vmem:[#allocation7 + $0x250] sm:$0xff]
    %v592 = vld [vmem:[#allocation7 + $0x258] sm:$0xff]
    %v593 = vld [vmem:[#allocation7 + $0x290] sm:$0xff]
    %v594 = vld [vmem:[#allocation7 + $0x298] sm:$0xff]
    %v595 = vld [vmem:[#allocation7 + $0x2d0] sm:$0xff]
    %v596 = vld [vmem:[#allocation7 + $0x2d8] sm:$0xff]
    %v597 = vld [vmem:[#allocation7 + $0x310] sm:$0xff]
    %v598 = vld [vmem:[#allocation7 + $0x318] sm:$0xff]
    %v599 = vld [vmem:[#allocation7 + $0x350] sm:$0xff]
    %v600 = vld [vmem:[#allocation7 + $0x358] sm:$0xff]
    %v601 = vld [vmem:[#allocation7 + $0x390] sm:$0xff]
    %v602 = vld [vmem:[#allocation7 + $0x398] sm:$0xff]
    %v603 = vld [vmem:[#allocation7 + $0x3d0] sm:$0xff]
    %v604 = vld [vmem:[#allocation7 + $0x3d8] sm:$0xff]
    %v605 = vld [vmem:[#allocation8 + $0x4] sm:$0xf]
    %v607 = vlaneseq
    %v608 = vshrl.u32 %v607, 7
    %v609 = vsub.s32 0, %v608
    %v610 = vrot.slane %v605, %v609
    %v611 = vlaneseq
    %v612 = vshrl.u32 %v611, 7
    %v613 = vsub.s32 1, %v612
    %v614 = vrot.slane %v605, %v613
    %v615 = vlaneseq
    %v616 = vshrl.u32 %v615, 7
    %v617 = vsub.s32 2, %v616
    %v618 = vrot.slane %v605, %v617
    %v619 = vlaneseq
    %v620 = vshrl.u32 %v619, 7
    %v621 = vsub.s32 3, %v620
    %v622 = vrot.slane %v605, %v621
    %v659 = vunpack.c.l.b16 %v573
    %v660 = vunpack.c.h.b16 %v573
    %v661 = vunpack.c.l.b16 %v574
    %v662 = vunpack.c.h.b16 %v574
    %v663 = vunpack.c.l.b16 %v575
    %v664 = vunpack.c.h.b16 %v575
    %v665 = vunpack.c.l.b16 %v576
    %v666 = vunpack.c.h.b16 %v576
    %v667 = vunpack.c.l.b16 %v577
    %v668 = vunpack.c.h.b16 %v577
    %v669 = vunpack.c.l.b16 %v578
    %v670 = vunpack.c.h.b16 %v578
    %v671 = vunpack.c.l.b16 %v579
    %v672 = vunpack.c.h.b16 %v579
    %v673 = vunpack.c.l.b16 %v580
    %v674 = vunpack.c.h.b16 %v580
    %v675 = vunpack.c.l.b16 %v581
    %v676 = vunpack.c.h.b16 %v581
    %v677 = vunpack.c.l.b16 %v582
    %v678 = vunpack.c.h.b16 %v582
    %v679 = vunpack.c.l.b16 %v583
    %v680 = vunpack.c.h.b16 %v583
    %v681 = vunpack.c.l.b16 %v584
    %v682 = vunpack.c.h.b16 %v584
    %v683 = vunpack.c.l.b16 %v585
    %v684 = vunpack.c.h.b16 %v585
    %v685 = vunpack.c.l.b16 %v586
    %v686 = vunpack.c.h.b16 %v586
    %v687 = vunpack.c.l.b16 %v587
    %v688 = vunpack.c.h.b16 %v587
    %v689 = vunpack.c.l.b16 %v588
    %v690 = vunpack.c.h.b16 %v588
    %v691 = vunpack.c.l.b16 %v589
    %v692 = vunpack.c.h.b16 %v589
    %v693 = vunpack.c.l.b16 %v590
    %v694 = vunpack.c.h.b16 %v590
    %v695 = vunpack.c.l.b16 %v591
    %v696 = vunpack.c.h.b16 %v591
    %v697 = vunpack.c.l.b16 %v592
    %v698 = vunpack.c.h.b16 %v592
    %v699 = vunpack.c.l.b16 %v593
    %v700 = vunpack.c.h.b16 %v593
    %v701 = vunpack.c.l.b16 %v594
    %v702 = vunpack.c.h.b16 %v594
    %v703 = vunpack.c.l.b16 %v595
    %v704 = vunpack.c.h.b16 %v595
    %v705 = vunpack.c.l.b16 %v596
    %v706 = vunpack.c.h.b16 %v596
    %v707 = vunpack.c.l.b16 %v597
    %v708 = vunpack.c.h.b16 %v597
    %v709 = vunpack.c.l.b16 %v598
    %v710 = vunpack.c.h.b16 %v598
    %v711 = vunpack.c.l.b16 %v599
    %v712 = vunpack.c.h.b16 %v599
    %v713 = vunpack.c.l.b16 %v600
    %v714 = vunpack.c.h.b16 %v600
    %v715 = vunpack.c.l.b16 %v601
    %v716 = vunpack.c.h.b16 %v601
    %v717 = vunpack.c.l.b16 %v602
    %v718 = vunpack.c.h.b16 %v602
    %v719 = vunpack.c.l.b16 %v603
    %v720 = vunpack.c.h.b16 %v603
    %v721 = vunpack.c.l.b16 %v604
    %v722 = vunpack.c.h.b16 %v604
    %v723 = vpack.c.b16 %v663, %v659
    %v724 = vpack.c.b16 %v664, %v660
    %v725 = vpack.c.b16 %v665, %v661
    %v726 = vpack.c.b16 %v666, %v662
    %v727 = vpack.c.b16 %v671, %v667
    %v728 = vpack.c.b16 %v672, %v668
    %v729 = vpack.c.b16 %v673, %v669
    %v730 = vpack.c.b16 %v674, %v670
    %v731 = vpack.c.b16 %v679, %v675
    %v732 = vpack.c.b16 %v680, %v676
    %v733 = vpack.c.b16 %v681, %v677
    %v734 = vpack.c.b16 %v682, %v678
    %v735 = vpack.c.b16 %v687, %v683
    %v736 = vpack.c.b16 %v688, %v684
    %v737 = vpack.c.b16 %v689, %v685
    %v738 = vpack.c.b16 %v690, %v686
    %v739 = vpack.c.b16 %v695, %v691
    %v740 = vpack.c.b16 %v696, %v692
    %v741 = vpack.c.b16 %v697, %v693
    %v742 = vpack.c.b16 %v698, %v694
    %v743 = vpack.c.b16 %v703, %v699
    %v744 = vpack.c.b16 %v704, %v700
    %v745 = vpack.c.b16 %v705, %v701
    %v746 = vpack.c.b16 %v706, %v702
    %v747 = vpack.c.b16 %v711, %v707
    %v748 = vpack.c.b16 %v712, %v708
    %v749 = vpack.c.b16 %v713, %v709
    %v750 = vpack.c.b16 %v714, %v710
    %v751 = vpack.c.b16 %v719, %v715
    %v752 = vpack.c.b16 %v720, %v716
    %v753 = vpack.c.b16 %v721, %v717
    %v754 = vpack.c.b16 %v722, %v718
    %787 = vmatprep.subr.bf16.mxu0 %v752
    %788 = vmatpush1.bf16.msra.mxu0 %v751
    %789 = vmatprep.subr.bf16.mxu0 %v748
    %790 = vmatpush1.bf16.msra.mxu0 %v747
    %791 = vmatprep.subr.bf16.mxu0 %v744
    %792 = vmatpush1.bf16.msra.mxu0 %v743
    %793 = vmatprep.subr.bf16.mxu0 %v740
    %794 = vmatpush1.bf16.msra.mxu0 %v739
    %795 = vmatprep.subr.bf16.mxu0 %v736
    %796 = vmatpush1.bf16.msra.mxu0 %v735
    %797 = vmatprep.subr.bf16.mxu0 %v732
    %798 = vmatpush1.bf16.msra.mxu0 %v731
    %799 = vmatprep.subr.bf16.mxu0 %v728
    %800 = vmatpush1.bf16.msra.mxu0 %v727
    %801 = vmatprep.subr.bf16.mxu0 %v724
    %802 = vmatpush1.bf16.msra.mxu0 %v723
    %803 = vmatprep.subr.bf16.mxu0 0
    %804 = vmatpush2.bf16.msra.mxu0 0
    %805 = vmatprep.subr.bf16.mxu0 0
    %806 = vmatpush2.bf16.msra.mxu0 0
    %807 = vmatprep.subr.bf16.mxu0 0
    %808 = vmatpush2.bf16.msra.mxu0 0
    %809 = vmatprep.subr.bf16.mxu0 0
    %810 = vmatpush2.bf16.msra.mxu0 0
    %811 = vmatprep.subr.bf16.mxu0 0
    %812 = vmatpush2.bf16.msra.mxu0 0
    %813 = vmatprep.subr.bf16.mxu0 0
    %814 = vmatpush2.bf16.msra.mxu0 0
    %815 = vmatprep.subr.bf16.mxu0 0
    %816 = vmatpush2.bf16.msra.mxu0 0
    %817 = vmatprep.subr.bf16.mxu0 0
    %818 = vmatpush2.bf16.msra.mxu0 0
    %819 = vmatprep.mubr.bf16.mxu0 0
    %820 = vmatmul.mubr.bf16.gmra.mxu0 %v93
    %v821 = vpop.f32.mrf.mxu0
    %v822 = vadd.f32 %v610, %v821
    %v823 = vpop.f32.mrf.mxu0
    %v824 = vadd.f32 %v614, %v823
    %v825 = vpop.f32.mrf.mxu0
    %v826 = vpop.f32.mrf.mxu0
    %827 = vdwg.mxu0
    %828 = vmatprep.subr.bf16.mxu0 %v754
    %829 = vmatpush1.bf16.msra.mxu0 %v753
    %830 = vmatprep.subr.bf16.mxu0 %v750
    %831 = vmatpush1.bf16.msra.mxu0 %v749
    %832 = vmatprep.subr.bf16.mxu0 %v746
    %833 = vmatpush1.bf16.msra.mxu0 %v745
    %834 = vmatprep.subr.bf16.mxu0 %v742
    %835 = vmatpush1.bf16.msra.mxu0 %v741
    %836 = vmatprep.subr.bf16.mxu0 %v738
    %837 = vmatpush1.bf16.msra.mxu0 %v737
    %838 = vmatprep.subr.bf16.mxu0 %v734
    %839 = vmatpush1.bf16.msra.mxu0 %v733
    %840 = vmatprep.subr.bf16.mxu0 %v730
    %841 = vmatpush1.bf16.msra.mxu0 %v729
    %842 = vmatprep.subr.bf16.mxu0 %v726
    %843 = vmatpush1.bf16.msra.mxu0 %v725
    %844 = vmatprep.subr.bf16.mxu0 0
    %845 = vmatpush2.bf16.msra.mxu0 0
    %846 = vmatprep.subr.bf16.mxu0 0
    %847 = vmatpush2.bf16.msra.mxu0 0
    %848 = vmatprep.subr.bf16.mxu0 0
    %849 = vmatpush2.bf16.msra.mxu0 0
    %850 = vmatprep.subr.bf16.mxu0 0
    %851 = vmatpush2.bf16.msra.mxu0 0
    %852 = vmatprep.subr.bf16.mxu0 0
    %853 = vmatpush2.bf16.msra.mxu0 0
    %854 = vmatprep.subr.bf16.mxu0 0
    %855 = vmatpush2.bf16.msra.mxu0 0
    %856 = vmatprep.subr.bf16.mxu0 0
    %857 = vmatpush2.bf16.msra.mxu0 0
    %858 = vmatprep.subr.bf16.mxu0 0
    %859 = vmatpush2.bf16.msra.mxu0 0
    %860 = vmatprep.mubr.bf16.mxu0 0
    %861 = vmatmul.mubr.bf16.gmra.mxu0 %v93
    %v862 = vpop.f32.mrf.mxu0
    %v863 = vadd.f32 %v618, %v862
    %v864 = vpop.f32.mrf.mxu0
    %v865 = vadd.f32 %v622, %v864
    %v866 = vpop.f32.mrf.mxu0
    %v867 = vpop.f32.mrf.mxu0
    %868 = vdwg.mxu0
    %v869 = vmax.f32 %v822, 0.0
    %v870 = vmax.f32 %v824, 0.0
    %v871 = vmax.f32 %v863, 0.0
    %v872 = vmax.f32 %v865, 0.0
    %v873 = vpack.c.bf16 %v869, %v869
    %v874 = vpack.c.bf16 %v870, %v870
    %v875 = vpack.c.bf16 %v871, %v871
    %v876 = vpack.c.bf16 %v872, %v872
    %v877 = vld [vmem:[#allocation10 + $0x100] sm:$0xf]
    %v878 = vld [vmem:[#allocation10 + $0x104] sm:$0xf]
    %v879 = vld [vmem:[#allocation10 + $0x108] sm:$0xf]
    %v880 = vld [vmem:[#allocation10 + $0x10c] sm:$0xf]
    %v881 = vld [vmem:[#allocation10 + $0x110] sm:$0xf]
    %v882 = vld [vmem:[#allocation10 + $0x114] sm:$0xf]
    %v883 = vld [vmem:[#allocation10 + $0x118] sm:$0xf]
    %v884 = vld [vmem:[#allocation10 + $0x11c] sm:$0xf]
    %v885 = vld [vmem:[#allocation10 + $0x120] sm:$0xf]
    %v886 = vld [vmem:[#allocation10 + $0x124] sm:$0xf]
    %v887 = vld [vmem:[#allocation10 + $0x128] sm:$0xf]
    %v888 = vld [vmem:[#allocation10 + $0x12c] sm:$0xf]
    %v889 = vld [vmem:[#allocation10 + $0x130] sm:$0xf]
    %v890 = vld [vmem:[#allocation10 + $0x134] sm:$0xf]
    %v891 = vld [vmem:[#allocation10 + $0x138] sm:$0xf]
    %v892 = vld [vmem:[#allocation10 + $0x13c] sm:$0xf]
    %v893 = vld [vmem:[#allocation10 + $0x140] sm:$0xf]
    %v894 = vld [vmem:[#allocation10 + $0x144] sm:$0xf]
    %v895 = vld [vmem:[#allocation10 + $0x148] sm:$0xf]
    %v896 = vld [vmem:[#allocation10 + $0x14c] sm:$0xf]
    %v897 = vld [vmem:[#allocation10 + $0x150] sm:$0xf]
    %v898 = vld [vmem:[#allocation10 + $0x154] sm:$0xf]
    %v899 = vld [vmem:[#allocation10 + $0x158] sm:$0xf]
    %v900 = vld [vmem:[#allocation10 + $0x15c] sm:$0xf]
    %v901 = vld [vmem:[#allocation10 + $0x160] sm:$0xf]
    %v902 = vld [vmem:[#allocation10 + $0x164] sm:$0xf]
    %v903 = vld [vmem:[#allocation10 + $0x168] sm:$0xf]
    %v904 = vld [vmem:[#allocation10 + $0x16c] sm:$0xf]
    %v905 = vld [vmem:[#allocation10 + $0x170] sm:$0xf]
    %v906 = vld [vmem:[#allocation10 + $0x174] sm:$0xf]
    %v907 = vld [vmem:[#allocation10 + $0x178] sm:$0xf]
    %v908 = vld [vmem:[#allocation10 + $0x17c] sm:$0xf]
    %v909 = vld [vmem:[#allocation10 + $0x180] sm:$0xf]
    %v910 = vld [vmem:[#allocation10 + $0x184] sm:$0xf]
    %v911 = vld [vmem:[#allocation10 + $0x188] sm:$0xf]
    %v912 = vld [vmem:[#allocation10 + $0x18c] sm:$0xf]
    %v913 = vld [vmem:[#allocation10 + $0x190] sm:$0xf]
    %v914 = vld [vmem:[#allocation10 + $0x194] sm:$0xf]
    %v915 = vld [vmem:[#allocation10 + $0x198] sm:$0xf]
    %v916 = vld [vmem:[#allocation10 + $0x19c] sm:$0xf]
    %v917 = vld [vmem:[#allocation10 + $0x1a0] sm:$0xf]
    %v918 = vld [vmem:[#allocation10 + $0x1a4] sm:$0xf]
    %v919 = vld [vmem:[#allocation10 + $0x1a8] sm:$0xf]
    %v920 = vld [vmem:[#allocation10 + $0x1ac] sm:$0xf]
    %v921 = vld [vmem:[#allocation10 + $0x1b0] sm:$0xf]
    %v922 = vld [vmem:[#allocation10 + $0x1b4] sm:$0xf]
    %v923 = vld [vmem:[#allocation10 + $0x1b8] sm:$0xf]
    %v924 = vld [vmem:[#allocation10 + $0x1bc] sm:$0xf]
    %v925 = vld [vmem:[#allocation10 + $0x1c0] sm:$0xf]
    %v926 = vld [vmem:[#allocation10 + $0x1c4] sm:$0xf]
    %v927 = vld [vmem:[#allocation10 + $0x1c8] sm:$0xf]
    %v928 = vld [vmem:[#allocation10 + $0x1cc] sm:$0xf]
    %v929 = vld [vmem:[#allocation10 + $0x1d0] sm:$0xf]
    %v930 = vld [vmem:[#allocation10 + $0x1d4] sm:$0xf]
    %v931 = vld [vmem:[#allocation10 + $0x1d8] sm:$0xf]
    %v932 = vld [vmem:[#allocation10 + $0x1dc] sm:$0xf]
    %v933 = vld [vmem:[#allocation10 + $0x1e0] sm:$0xf]
    %v934 = vld [vmem:[#allocation10 + $0x1e4] sm:$0xf]
    %v935 = vld [vmem:[#allocation10 + $0x1e8] sm:$0xf]
    %v936 = vld [vmem:[#allocation10 + $0x1ec] sm:$0xf]
    %v937 = vld [vmem:[#allocation10 + $0x1f0] sm:$0xf]
    %v938 = vld [vmem:[#allocation10 + $0x1f4] sm:$0xf]
    %v939 = vld [vmem:[#allocation10 + $0x1f8] sm:$0xf]
    %v940 = vld [vmem:[#allocation10 + $0x1fc] sm:$0xf]
    %v1005 = vunpack.c.l.b16 %v877
    %v1006 = vunpack.c.l.b16 %v878
    %v1007 = vunpack.c.l.b16 %v879
    %v1008 = vunpack.c.l.b16 %v880
    %v1009 = vunpack.c.l.b16 %v881
    %v1010 = vunpack.c.l.b16 %v882
    %v1011 = vunpack.c.l.b16 %v883
    %v1012 = vunpack.c.l.b16 %v884
    %v1013 = vunpack.c.l.b16 %v885
    %v1014 = vunpack.c.l.b16 %v886
    %v1015 = vunpack.c.l.b16 %v887
    %v1016 = vunpack.c.l.b16 %v888
    %v1017 = vunpack.c.l.b16 %v889
    %v1018 = vunpack.c.l.b16 %v890
    %v1019 = vunpack.c.l.b16 %v891
    %v1020 = vunpack.c.l.b16 %v892
    %v1021 = vunpack.c.l.b16 %v893
    %v1022 = vunpack.c.l.b16 %v894
    %v1023 = vunpack.c.l.b16 %v895
    %v1024 = vunpack.c.l.b16 %v896
    %v1025 = vunpack.c.l.b16 %v897
    %v1026 = vunpack.c.l.b16 %v898
    %v1027 = vunpack.c.l.b16 %v899
    %v1028 = vunpack.c.l.b16 %v900
    %v1029 = vunpack.c.l.b16 %v901
    %v1030 = vunpack.c.l.b16 %v902
    %v1031 = vunpack.c.l.b16 %v903
    %v1032 = vunpack.c.l.b16 %v904
    %v1033 = vunpack.c.l.b16 %v905
    %v1034 = vunpack.c.l.b16 %v906
    %v1035 = vunpack.c.l.b16 %v907
    %v1036 = vunpack.c.l.b16 %v908
    %v1037 = vunpack.c.l.b16 %v909
    %v1038 = vunpack.c.l.b16 %v910
    %v1039 = vunpack.c.l.b16 %v911
    %v1040 = vunpack.c.l.b16 %v912
    %v1041 = vunpack.c.l.b16 %v913
    %v1042 = vunpack.c.l.b16 %v914
    %v1043 = vunpack.c.l.b16 %v915
    %v1044 = vunpack.c.l.b16 %v916
    %v1045 = vunpack.c.l.b16 %v917
    %v1046 = vunpack.c.l.b16 %v918
    %v1047 = vunpack.c.l.b16 %v919
    %v1048 = vunpack.c.l.b16 %v920
    %v1049 = vunpack.c.l.b16 %v921
    %v1050 = vunpack.c.l.b16 %v922
    %v1051 = vunpack.c.l.b16 %v923
    %v1052 = vunpack.c.l.b16 %v924
    %v1053 = vunpack.c.l.b16 %v925
    %v1054 = vunpack.c.l.b16 %v926
    %v1055 = vunpack.c.l.b16 %v927
    %v1056 = vunpack.c.l.b16 %v928
    %v1057 = vunpack.c.l.b16 %v929
    %v1058 = vunpack.c.l.b16 %v930
    %v1059 = vunpack.c.l.b16 %v931
    %v1060 = vunpack.c.l.b16 %v932
    %v1061 = vunpack.c.l.b16 %v933
    %v1062 = vunpack.c.l.b16 %v934
    %v1063 = vunpack.c.l.b16 %v935
    %v1064 = vunpack.c.l.b16 %v936
    %v1065 = vunpack.c.l.b16 %v937
    %v1066 = vunpack.c.l.b16 %v938
    %v1067 = vunpack.c.l.b16 %v939
    %v1068 = vunpack.c.l.b16 %v940
    %v1069 = vpack.c.b16 %v1006, %v1005
    %v1070 = vpack.c.b16 %v1008, %v1007
    %v1071 = vpack.c.b16 %v1010, %v1009
    %v1072 = vpack.c.b16 %v1012, %v1011
    %v1073 = vpack.c.b16 %v1014, %v1013
    %v1074 = vpack.c.b16 %v1016, %v1015
    %v1075 = vpack.c.b16 %v1018, %v1017
    %v1076 = vpack.c.b16 %v1020, %v1019
    %v1077 = vpack.c.b16 %v1022, %v1021
    %v1078 = vpack.c.b16 %v1024, %v1023
    %v1079 = vpack.c.b16 %v1026, %v1025
    %v1080 = vpack.c.b16 %v1028, %v1027
    %v1081 = vpack.c.b16 %v1030, %v1029
    %v1082 = vpack.c.b16 %v1032, %v1031
    %v1083 = vpack.c.b16 %v1034, %v1033
    %v1084 = vpack.c.b16 %v1036, %v1035
    %v1085 = vpack.c.b16 %v1038, %v1037
    %v1086 = vpack.c.b16 %v1040, %v1039
    %v1087 = vpack.c.b16 %v1042, %v1041
    %v1088 = vpack.c.b16 %v1044, %v1043
    %v1089 = vpack.c.b16 %v1046, %v1045
    %v1090 = vpack.c.b16 %v1048, %v1047
    %v1091 = vpack.c.b16 %v1050, %v1049
    %v1092 = vpack.c.b16 %v1052, %v1051
    %v1093 = vpack.c.b16 %v1054, %v1053
    %v1094 = vpack.c.b16 %v1056, %v1055
    %v1095 = vpack.c.b16 %v1058, %v1057
    %v1096 = vpack.c.b16 %v1060, %v1059
    %v1097 = vpack.c.b16 %v1062, %v1061
    %v1098 = vpack.c.b16 %v1064, %v1063
    %v1099 = vpack.c.b16 %v1066, %v1065
    %v1100 = vpack.c.b16 %v1068, %v1067
    %1133 = vmatprep.subr.bf16.mxu0 0
    %1134 = vmatpush1.bf16.msra.mxu0 %v1076
    %1135 = vmatprep.subr.bf16.mxu0 0
    %1136 = vmatpush1.bf16.msra.mxu0 %v1075
    %1137 = vmatprep.subr.bf16.mxu0 0
    %1138 = vmatpush1.bf16.msra.mxu0 %v1074
    %1139 = vmatprep.subr.bf16.mxu0 0
    %1140 = vmatpush1.bf16.msra.mxu0 %v1073
    %1141 = vmatprep.subr.bf16.mxu0 0
    %1142 = vmatpush1.bf16.msra.mxu0 %v1072
    %1143 = vmatprep.subr.bf16.mxu0 0
    %1144 = vmatpush1.bf16.msra.mxu0 %v1071
    %1145 = vmatprep.subr.bf16.mxu0 0
    %1146 = vmatpush1.bf16.msra.mxu0 %v1070
    %1147 = vmatprep.subr.bf16.mxu0 0
    %1148 = vmatpush1.bf16.msra.mxu0 %v1069
    %1149 = vmatprep.subr.bf16.mxu0 0
    %1150 = vmatpush2.bf16.msra.mxu0 %v1084
    %1151 = vmatprep.subr.bf16.mxu0 0
    %1152 = vmatpush2.bf16.msra.mxu0 %v1083
    %1153 = vmatprep.subr.bf16.mxu0 0
    %1154 = vmatpush2.bf16.msra.mxu0 %v1082
    %1155 = vmatprep.subr.bf16.mxu0 0
    %1156 = vmatpush2.bf16.msra.mxu0 %v1081
    %1157 = vmatprep.subr.bf16.mxu0 0
    %1158 = vmatpush2.bf16.msra.mxu0 %v1080
    %1159 = vmatprep.subr.bf16.mxu0 0
    %1160 = vmatpush2.bf16.msra.mxu0 %v1079
    %1161 = vmatprep.subr.bf16.mxu0 0
    %1162 = vmatpush2.bf16.msra.mxu0 %v1078
    %1163 = vmatprep.subr.bf16.mxu0 0
    %1164 = vmatpush2.bf16.msra.mxu0 %v1077
    %1165 = vmatprep.mubr.bf16.mxu0 %v874
    %1166 = vmatmul.mubr.bf16.gmra.mxu0 %v873
    %v1167 = vpop.f32.mrf.mxu0
    %v1168 = vadd.f32 0.0, %v1167
    %v1169 = vpop.f32.mrf.mxu0
    %v1170 = vpop.f32.mrf.mxu0
    %v1171 = vpop.f32.mrf.mxu0
    %1172 = vdwg.mxu0
    %1173 = vmatprep.subr.bf16.mxu0 0
    %1174 = vmatpush1.bf16.msra.mxu0 %v1092
    %1175 = vmatprep.subr.bf16.mxu0 0
    %1176 = vmatpush1.bf16.msra.mxu0 %v1091
    %1177 = vmatprep.subr.bf16.mxu0 0
    %1178 = vmatpush1.bf16.msra.mxu0 %v1090
    %1179 = vmatprep.subr.bf16.mxu0 0
    %1180 = vmatpush1.bf16.msra.mxu0 %v1089
    %1181 = vmatprep.subr.bf16.mxu0 0
    %1182 = vmatpush1.bf16.msra.mxu0 %v1088
    %1183 = vmatprep.subr.bf16.mxu0 0
    %1184 = vmatpush1.bf16.msra.mxu0 %v1087
    %1185 = vmatprep.subr.bf16.mxu0 0
    %1186 = vmatpush1.bf16.msra.mxu0 %v1086
    %1187 = vmatprep.subr.bf16.mxu0 0
    %1188 = vmatpush1.bf16.msra.mxu0 %v1085
    %1189 = vmatprep.subr.bf16.mxu0 0
    %1190 = vmatpush2.bf16.msra.mxu0 %v1100
    %1191 = vmatprep.subr.bf16.mxu0 0
    %1192 = vmatpush2.bf16.msra.mxu0 %v1099
    %1193 = vmatprep.subr.bf16.mxu0 0
    %1194 = vmatpush2.bf16.msra.mxu0 %v1098
    %1195 = vmatprep.subr.bf16.mxu0 0
    %1196 = vmatpush2.bf16.msra.mxu0 %v1097
    %1197 = vmatprep.subr.bf16.mxu0 0
    %1198 = vmatpush2.bf16.msra.mxu0 %v1096
    %1199 = vmatprep.subr.bf16.mxu0 0
    %1200 = vmatpush2.bf16.msra.mxu0 %v1095
    %1201 = vmatprep.subr.bf16.mxu0 0
    %1202 = vmatpush2.bf16.msra.mxu0 %v1094
    %1203 = vmatprep.subr.bf16.mxu0 0
    %1204 = vmatpush2.bf16.msra.mxu0 %v1093
    %1205 = vmatprep.mubr.bf16.mxu0 %v876
    %1206 = vmatmul.mubr.bf16.gmra.mxu0 %v875
    %v1207 = vpop.f32.mrf.mxu0
    %v1208 = vadd.f32 %v1168, %v1207
    %v1209 = vpop.f32.mrf.mxu0
    %v1210 = vpop.f32.mrf.mxu0
    %v1211 = vpop.f32.mrf.mxu0
    %1212 = vdwg.mxu0
    %v1277 = vunpack.c.l.b16 %v509
    %v1278 = vunpack.c.l.b16 %v510
    %v1279 = vunpack.c.l.b16 %v511
    %v1280 = vunpack.c.l.b16 %v512
    %v1281 = vunpack.c.l.b16 %v513
    %v1282 = vunpack.c.l.b16 %v514
    %v1283 = vunpack.c.l.b16 %v515
    %v1284 = vunpack.c.l.b16 %v516
    %v1285 = vunpack.c.l.b16 %v517
    %v1286 = vunpack.c.l.b16 %v518
    %v1287 = vunpack.c.l.b16 %v519
    %v1288 = vunpack.c.l.b16 %v520
    %v1289 = vunpack.c.l.b16 %v521
    %v1290 = vunpack.c.l.b16 %v522
    %v1291 = vunpack.c.l.b16 %v523
    %v1292 = vunpack.c.l.b16 %v524
    %v1293 = vunpack.c.l.b16 %v525
    %v1294 = vunpack.c.l.b16 %v526
    %v1295 = vunpack.c.l.b16 %v527
    %v1296 = vunpack.c.l.b16 %v528
    %v1297 = vunpack.c.l.b16 %v529
    %v1298 = vunpack.c.l.b16 %v530
    %v1299 = vunpack.c.l.b16 %v531
    %v1300 = vunpack.c.l.b16 %v532
    %v1301 = vunpack.c.l.b16 %v533
    %v1302 = vunpack.c.l.b16 %v534
    %v1303 = vunpack.c.l.b16 %v535
    %v1304 = vunpack.c.l.b16 %v536
    %v1305 = vunpack.c.l.b16 %v537
    %v1306 = vunpack.c.l.b16 %v538
    %v1307 = vunpack.c.l.b16 %v539
    %v1308 = vunpack.c.l.b16 %v540
    %v1309 = vunpack.c.l.b16 %v541
    %v1310 = vunpack.c.l.b16 %v542
    %v1311 = vunpack.c.l.b16 %v543
    %v1312 = vunpack.c.l.b16 %v544
    %v1313 = vunpack.c.l.b16 %v545
    %v1314 = vunpack.c.l.b16 %v546
    %v1315 = vunpack.c.l.b16 %v547
    %v1316 = vunpack.c.l.b16 %v548
    %v1317 = vunpack.c.l.b16 %v549
    %v1318 = vunpack.c.l.b16 %v550
    %v1319 = vunpack.c.l.b16 %v551
    %v1320 = vunpack.c.l.b16 %v552
    %v1321 = vunpack.c.l.b16 %v553
    %v1322 = vunpack.c.l.b16 %v554
    %v1323 = vunpack.c.l.b16 %v555
    %v1324 = vunpack.c.l.b16 %v556
    %v1325 = vunpack.c.l.b16 %v557
    %v1326 = vunpack.c.l.b16 %v558
    %v1327 = vunpack.c.l.b16 %v559
    %v1328 = vunpack.c.l.b16 %v560
    %v1329 = vunpack.c.l.b16 %v561
    %v1330 = vunpack.c.l.b16 %v562
    %v1331 = vunpack.c.l.b16 %v563
    %v1332 = vunpack.c.l.b16 %v564
    %v1333 = vunpack.c.l.b16 %v565
    %v1334 = vunpack.c.l.b16 %v566
    %v1335 = vunpack.c.l.b16 %v567
    %v1336 = vunpack.c.l.b16 %v568
    %v1337 = vunpack.c.l.b16 %v569
    %v1338 = vunpack.c.l.b16 %v570
    %v1339 = vunpack.c.l.b16 %v571
    %v1340 = vunpack.c.l.b16 %v572
    %v1341 = vpack.c.b16 %v1278, %v1277
    %v1342 = vpack.c.b16 %v1280, %v1279
    %v1343 = vpack.c.b16 %v1282, %v1281
    %v1344 = vpack.c.b16 %v1284, %v1283
    %v1345 = vpack.c.b16 %v1286, %v1285
    %v1346 = vpack.c.b16 %v1288, %v1287
    %v1347 = vpack.c.b16 %v1290, %v1289
    %v1348 = vpack.c.b16 %v1292, %v1291
    %v1349 = vpack.c.b16 %v1294, %v1293
    %v1350 = vpack.c.b16 %v1296, %v1295
    %v1351 = vpack.c.b16 %v1298, %v1297
    %v1352 = vpack.c.b16 %v1300, %v1299
    %v1353 = vpack.c.b16 %v1302, %v1301
    %v1354 = vpack.c.b16 %v1304, %v1303
    %v1355 = vpack.c.b16 %v1306, %v1305
    %v1356 = vpack.c.b16 %v1308, %v1307
    %v1357 = vpack.c.b16 %v1310, %v1309
    %v1358 = vpack.c.b16 %v1312, %v1311
    %v1359 = vpack.c.b16 %v1314, %v1313
    %v1360 = vpack.c.b16 %v1316, %v1315
    %v1361 = vpack.c.b16 %v1318, %v1317
    %v1362 = vpack.c.b16 %v1320, %v1319
    %v1363 = vpack.c.b16 %v1322, %v1321
    %v1364 = vpack.c.b16 %v1324, %v1323
    %v1365 = vpack.c.b16 %v1326, %v1325
    %v1366 = vpack.c.b16 %v1328, %v1327
    %v1367 = vpack.c.b16 %v1330, %v1329
    %v1368 = vpack.c.b16 %v1332, %v1331
    %v1369 = vpack.c.b16 %v1334, %v1333
    %v1370 = vpack.c.b16 %v1336, %v1335
    %v1371 = vpack.c.b16 %v1338, %v1337
    %v1372 = vpack.c.b16 %v1340, %v1339
    %1405 = vmatprep.subr.bf16.mxu0 0
    %1406 = vmatpush1.bf16.msra.mxu0 %v1348
    %1407 = vmatprep.subr.bf16.mxu0 0
    %1408 = vmatpush1.bf16.msra.mxu0 %v1347
    %1409 = vmatprep.subr.bf16.mxu0 0
    %1410 = vmatpush1.bf16.msra.mxu0 %v1346
    %1411 = vmatprep.subr.bf16.mxu0 0
    %1412 = vmatpush1.bf16.msra.mxu0 %v1345
    %1413 = vmatprep.subr.bf16.mxu0 0
    %1414 = vmatpush1.bf16.msra.mxu0 %v1344
    %1415 = vmatprep.subr.bf16.mxu0 0
    %1416 = vmatpush1.bf16.msra.mxu0 %v1343
    %1417 = vmatprep.subr.bf16.mxu0 0
    %1418 = vmatpush1.bf16.msra.mxu0 %v1342
    %1419 = vmatprep.subr.bf16.mxu0 0
    %1420 = vmatpush1.bf16.msra.mxu0 %v1341
    %1421 = vmatprep.subr.bf16.mxu0 0
    %1422 = vmatpush2.bf16.msra.mxu0 %v1356
    %1423 = vmatprep.subr.bf16.mxu0 0
    %1424 = vmatpush2.bf16.msra.mxu0 %v1355
    %1425 = vmatprep.subr.bf16.mxu0 0
    %1426 = vmatpush2.bf16.msra.mxu0 %v1354
    %1427 = vmatprep.subr.bf16.mxu0 0
    %1428 = vmatpush2.bf16.msra.mxu0 %v1353
    %1429 = vmatprep.subr.bf16.mxu0 0
    %1430 = vmatpush2.bf16.msra.mxu0 %v1352
    %1431 = vmatprep.subr.bf16.mxu0 0
    %1432 = vmatpush2.bf16.msra.mxu0 %v1351
    %1433 = vmatprep.subr.bf16.mxu0 0
    %1434 = vmatpush2.bf16.msra.mxu0 %v1350
    %1435 = vmatprep.subr.bf16.mxu0 0
    %1436 = vmatpush2.bf16.msra.mxu0 %v1349
    %1437 = vmatprep.mubr.bf16.mxu0 %v506
    %1438 = vmatmul.mubr.bf16.gmra.mxu0 %v505
    %v1439 = vpop.f32.mrf.mxu0
    %v1440 = vadd.f32 %v1208, %v1439
    %v1441 = vpop.f32.mrf.mxu0
    %v1442 = vpop.f32.mrf.mxu0
    %v1443 = vpop.f32.mrf.mxu0
    %1444 = vdwg.mxu0
    %1445 = vmatprep.subr.bf16.mxu0 0
    %1446 = vmatpush1.bf16.msra.mxu0 %v1364
    %1447 = vmatprep.subr.bf16.mxu0 0
    %1448 = vmatpush1.bf16.msra.mxu0 %v1363
    %1449 = vmatprep.subr.bf16.mxu0 0
    %1450 = vmatpush1.bf16.msra.mxu0 %v1362
    %1451 = vmatprep.subr.bf16.mxu0 0
    %1452 = vmatpush1.bf16.msra.mxu0 %v1361
    %1453 = vmatprep.subr.bf16.mxu0 0
    %1454 = vmatpush1.bf16.msra.mxu0 %v1360
    %1455 = vmatprep.subr.bf16.mxu0 0
    %1456 = vmatpush1.bf16.msra.mxu0 %v1359
    %1457 = vmatprep.subr.bf16.mxu0 0
    %1458 = vmatpush1.bf16.msra.mxu0 %v1358
    %1459 = vmatprep.subr.bf16.mxu0 0
    %1460 = vmatpush1.bf16.msra.mxu0 %v1357
    %1461 = vmatprep.subr.bf16.mxu0 0
    %1462 = vmatpush2.bf16.msra.mxu0 %v1372
    %1463 = vmatprep.subr.bf16.mxu0 0
    %1464 = vmatpush2.bf16.msra.mxu0 %v1371
    %1465 = vmatprep.subr.bf16.mxu0 0
    %1466 = vmatpush2.bf16.msra.mxu0 %v1370
    %1467 = vmatprep.subr.bf16.mxu0 0
    %1468 = vmatpush2.bf16.msra.mxu0 %v1369
    %1469 = vmatprep.subr.bf16.mxu0 0
    %1470 = vmatpush2.bf16.msra.mxu0 %v1368
    %1471 = vmatprep.subr.bf16.mxu0 0
    %1472 = vmatpush2.bf16.msra.mxu0 %v1367
    %1473 = vmatprep.subr.bf16.mxu0 0
    %1474 = vmatpush2.bf16.msra.mxu0 %v1366
    %1475 = vmatprep.subr.bf16.mxu0 0
    %1476 = vmatpush2.bf16.msra.mxu0 %v1365
    %1477 = vmatprep.mubr.bf16.mxu0 %v508
    %1478 = vmatmul.mubr.bf16.gmra.mxu0 %v507
    %v1479 = vpop.f32.mrf.mxu0
    %v1480 = vadd.f32 %v1440, %v1479
    %v1481 = vpop.f32.mrf.mxu0
    %v1482 = vpop.f32.mrf.mxu0
    %v1483 = vpop.f32.mrf.mxu0
    %1484 = vdwg.mxu0
    %v1485 = vld [vmem:[#allocation7 + $0x20] sm:$0xff]
    %v1486 = vld [vmem:[#allocation7 + $0x28] sm:$0xff]
    %v1487 = vld [vmem:[#allocation7 + $0x60] sm:$0xff]
    %v1488 = vld [vmem:[#allocation7 + $0x68] sm:$0xff]
    %v1489 = vld [vmem:[#allocation7 + $0xa0] sm:$0xff]
    %v1490 = vld [vmem:[#allocation7 + $0xa8] sm:$0xff]
    %v1491 = vld [vmem:[#allocation7 + $0xe0] sm:$0xff]
    %v1492 = vld [vmem:[#allocation7 + $0xe8] sm:$0xff]
    %v1493 = vld [vmem:[#allocation7 + $0x120] sm:$0xff]
    %v1494 = vld [vmem:[#allocation7 + $0x128] sm:$0xff]
    %v1495 = vld [vmem:[#allocation7 + $0x160] sm:$0xff]
    %v1496 = vld [vmem:[#allocation7 + $0x168] sm:$0xff]
    %v1497 = vld [vmem:[#allocation7 + $0x1a0] sm:$0xff]
    %v1498 = vld [vmem:[#allocation7 + $0x1a8] sm:$0xff]
    %v1499 = vld [vmem:[#allocation7 + $0x1e0] sm:$0xff]
    %v1500 = vld [vmem:[#allocation7 + $0x1e8] sm:$0xff]
    %v1501 = vld [vmem:[#allocation7 + $0x220] sm:$0xff]
    %v1502 = vld [vmem:[#allocation7 + $0x228] sm:$0xff]
    %v1503 = vld [vmem:[#allocation7 + $0x260] sm:$0xff]
    %v1504 = vld [vmem:[#allocation7 + $0x268] sm:$0xff]
    %v1505 = vld [vmem:[#allocation7 + $0x2a0] sm:$0xff]
    %v1506 = vld [vmem:[#allocation7 + $0x2a8] sm:$0xff]
    %v1507 = vld [vmem:[#allocation7 + $0x2e0] sm:$0xff]
    %v1508 = vld [vmem:[#allocation7 + $0x2e8] sm:$0xff]
    %v1509 = vld [vmem:[#allocation7 + $0x320] sm:$0xff]
    %v1510 = vld [vmem:[#allocation7 + $0x328] sm:$0xff]
    %v1511 = vld [vmem:[#allocation7 + $0x360] sm:$0xff]
    %v1512 = vld [vmem:[#allocation7 + $0x368] sm:$0xff]
    %v1513 = vld [vmem:[#allocation7 + $0x3a0] sm:$0xff]
    %v1514 = vld [vmem:[#allocation7 + $0x3a8] sm:$0xff]
    %v1515 = vld [vmem:[#allocation7 + $0x3e0] sm:$0xff]
    %v1516 = vld [vmem:[#allocation7 + $0x3e8] sm:$0xff]
    %v1517 = vld [vmem:[#allocation8 + $0x8] sm:$0xf]
    %v1519 = vlaneseq
    %v1520 = vshrl.u32 %v1519, 7
    %v1521 = vsub.s32 0, %v1520
    %v1522 = vrot.slane %v1517, %v1521
    %v1523 = vlaneseq
    %v1524 = vshrl.u32 %v1523, 7
    %v1525 = vsub.s32 1, %v1524
    %v1526 = vrot.slane %v1517, %v1525
    %v1527 = vlaneseq
    %v1528 = vshrl.u32 %v1527, 7
    %v1529 = vsub.s32 2, %v1528
    %v1530 = vrot.slane %v1517, %v1529
    %v1531 = vlaneseq
    %v1532 = vshrl.u32 %v1531, 7
    %v1533 = vsub.s32 3, %v1532
    %v1534 = vrot.slane %v1517, %v1533
    %v1571 = vunpack.c.l.b16 %v1485
    %v1572 = vunpack.c.h.b16 %v1485
    %v1573 = vunpack.c.l.b16 %v1486
    %v1574 = vunpack.c.h.b16 %v1486
    %v1575 = vunpack.c.l.b16 %v1487
    %v1576 = vunpack.c.h.b16 %v1487
    %v1577 = vunpack.c.l.b16 %v1488
    %v1578 = vunpack.c.h.b16 %v1488
    %v1579 = vunpack.c.l.b16 %v1489
    %v1580 = vunpack.c.h.b16 %v1489
    %v1581 = vunpack.c.l.b16 %v1490
    %v1582 = vunpack.c.h.b16 %v1490
    %v1583 = vunpack.c.l.b16 %v1491
    %v1584 = vunpack.c.h.b16 %v1491
    %v1585 = vunpack.c.l.b16 %v1492
    %v1586 = vunpack.c.h.b16 %v1492
    %v1587 = vunpack.c.l.b16 %v1493
    %v1588 = vunpack.c.h.b16 %v1493
    %v1589 = vunpack.c.l.b16 %v1494
    %v1590 = vunpack.c.h.b16 %v1494
    %v1591 = vunpack.c.l.b16 %v1495
    %v1592 = vunpack.c.h.b16 %v1495
    %v1593 = vunpack.c.l.b16 %v1496
    %v1594 = vunpack.c.h.b16 %v1496
    %v1595 = vunpack.c.l.b16 %v1497
    %v1596 = vunpack.c.h.b16 %v1497
    %v1597 = vunpack.c.l.b16 %v1498
    %v1598 = vunpack.c.h.b16 %v1498
    %v1599 = vunpack.c.l.b16 %v1499
    %v1600 = vunpack.c.h.b16 %v1499
    %v1601 = vunpack.c.l.b16 %v1500
    %v1602 = vunpack.c.h.b16 %v1500
    %v1603 = vunpack.c.l.b16 %v1501
    %v1604 = vunpack.c.h.b16 %v1501
    %v1605 = vunpack.c.l.b16 %v1502
    %v1606 = vunpack.c.h.b16 %v1502
    %v1607 = vunpack.c.l.b16 %v1503
    %v1608 = vunpack.c.h.b16 %v1503
    %v1609 = vunpack.c.l.b16 %v1504
    %v1610 = vunpack.c.h.b16 %v1504
    %v1611 = vunpack.c.l.b16 %v1505
    %v1612 = vunpack.c.h.b16 %v1505
    %v1613 = vunpack.c.l.b16 %v1506
    %v1614 = vunpack.c.h.b16 %v1506
    %v1615 = vunpack.c.l.b16 %v1507
    %v1616 = vunpack.c.h.b16 %v1507
    %v1617 = vunpack.c.l.b16 %v1508
    %v1618 = vunpack.c.h.b16 %v1508
    %v1619 = vunpack.c.l.b16 %v1509
    %v1620 = vunpack.c.h.b16 %v1509
    %v1621 = vunpack.c.l.b16 %v1510
    %v1622 = vunpack.c.h.b16 %v1510
    %v1623 = vunpack.c.l.b16 %v1511
    %v1624 = vunpack.c.h.b16 %v1511
    %v1625 = vunpack.c.l.b16 %v1512
    %v1626 = vunpack.c.h.b16 %v1512
    %v1627 = vunpack.c.l.b16 %v1513
    %v1628 = vunpack.c.h.b16 %v1513
    %v1629 = vunpack.c.l.b16 %v1514
    %v1630 = vunpack.c.h.b16 %v1514
    %v1631 = vunpack.c.l.b16 %v1515
    %v1632 = vunpack.c.h.b16 %v1515
    %v1633 = vunpack.c.l.b16 %v1516
    %v1634 = vunpack.c.h.b16 %v1516
    %v1635 = vpack.c.b16 %v1575, %v1571
    %v1636 = vpack.c.b16 %v1576, %v1572
    %v1637 = vpack.c.b16 %v1577, %v1573
    %v1638 = vpack.c.b16 %v1578, %v1574
    %v1639 = vpack.c.b16 %v1583, %v1579
    %v1640 = vpack.c.b16 %v1584, %v1580
    %v1641 = vpack.c.b16 %v1585, %v1581
    %v1642 = vpack.c.b16 %v1586, %v1582
    %v1643 = vpack.c.b16 %v1591, %v1587
    %v1644 = vpack.c.b16 %v1592, %v1588
    %v1645 = vpack.c.b16 %v1593, %v1589
    %v1646 = vpack.c.b16 %v1594, %v1590
    %v1647 = vpack.c.b16 %v1599, %v1595
    %v1648 = vpack.c.b16 %v1600, %v1596
    %v1649 = vpack.c.b16 %v1601, %v1597
    %v1650 = vpack.c.b16 %v1602, %v1598
    %v1651 = vpack.c.b16 %v1607, %v1603
    %v1652 = vpack.c.b16 %v1608, %v1604
    %v1653 = vpack.c.b16 %v1609, %v1605
    %v1654 = vpack.c.b16 %v1610, %v1606
    %v1655 = vpack.c.b16 %v1615, %v1611
    %v1656 = vpack.c.b16 %v1616, %v1612
    %v1657 = vpack.c.b16 %v1617, %v1613
    %v1658 = vpack.c.b16 %v1618, %v1614
    %v1659 = vpack.c.b16 %v1623, %v1619
    %v1660 = vpack.c.b16 %v1624, %v1620
    %v1661 = vpack.c.b16 %v1625, %v1621
    %v1662 = vpack.c.b16 %v1626, %v1622
    %v1663 = vpack.c.b16 %v1631, %v1627
    %v1664 = vpack.c.b16 %v1632, %v1628
    %v1665 = vpack.c.b16 %v1633, %v1629
    %v1666 = vpack.c.b16 %v1634, %v1630
    %1699 = vmatprep.subr.bf16.mxu0 %v1664
    %1700 = vmatpush1.bf16.msra.mxu0 %v1663
    %1701 = vmatprep.subr.bf16.mxu0 %v1660
    %1702 = vmatpush1.bf16.msra.mxu0 %v1659
    %1703 = vmatprep.subr.bf16.mxu0 %v1656
    %1704 = vmatpush1.bf16.msra.mxu0 %v1655
    %1705 = vmatprep.subr.bf16.mxu0 %v1652
    %1706 = vmatpush1.bf16.msra.mxu0 %v1651
    %1707 = vmatprep.subr.bf16.mxu0 %v1648
    %1708 = vmatpush1.bf16.msra.mxu0 %v1647
    %1709 = vmatprep.subr.bf16.mxu0 %v1644
    %1710 = vmatpush1.bf16.msra.mxu0 %v1643
    %1711 = vmatprep.subr.bf16.mxu0 %v1640
    %1712 = vmatpush1.bf16.msra.mxu0 %v1639
    %1713 = vmatprep.subr.bf16.mxu0 %v1636
    %1714 = vmatpush1.bf16.msra.mxu0 %v1635
    %1715 = vmatprep.subr.bf16.mxu0 0
    %1716 = vmatpush2.bf16.msra.mxu0 0
    %1717 = vmatprep.subr.bf16.mxu0 0
    %1718 = vmatpush2.bf16.msra.mxu0 0
    %1719 = vmatprep.subr.bf16.mxu0 0
    %1720 = vmatpush2.bf16.msra.mxu0 0
    %1721 = vmatprep.subr.bf16.mxu0 0
    %1722 = vmatpush2.bf16.msra.mxu0 0
    %1723 = vmatprep.subr.bf16.mxu0 0
    %1724 = vmatpush2.bf16.msra.mxu0 0
    %1725 = vmatprep.subr.bf16.mxu0 0
    %1726 = vmatpush2.bf16.msra.mxu0 0
    %1727 = vmatprep.subr.bf16.mxu0 0
    %1728 = vmatpush2.bf16.msra.mxu0 0
    %1729 = vmatprep.subr.bf16.mxu0 0
    %1730 = vmatpush2.bf16.msra.mxu0 0
    %1731 = vmatprep.mubr.bf16.mxu0 0
    %1732 = vmatmul.mubr.bf16.gmra.mxu0 %v93
    %v1733 = vpop.f32.mrf.mxu0
    %v1734 = vadd.f32 %v1522, %v1733
    %v1735 = vpop.f32.mrf.mxu0
    %v1736 = vadd.f32 %v1526, %v1735
    %v1737 = vpop.f32.mrf.mxu0
    %v1738 = vpop.f32.mrf.mxu0
    %1739 = vdwg.mxu0
    %1740 = vmatprep.subr.bf16.mxu0 %v1666
    %1741 = vmatpush1.bf16.msra.mxu0 %v1665
    %1742 = vmatprep.subr.bf16.mxu0 %v1662
    %1743 = vmatpush1.bf16.msra.mxu0 %v1661
    %1744 = vmatprep.subr.bf16.mxu0 %v1658
    %1745 = vmatpush1.bf16.msra.mxu0 %v1657
    %1746 = vmatprep.subr.bf16.mxu0 %v1654
    %1747 = vmatpush1.bf16.msra.mxu0 %v1653
    %1748 = vmatprep.subr.bf16.mxu0 %v1650
    %1749 = vmatpush1.bf16.msra.mxu0 %v1649
    %1750 = vmatprep.subr.bf16.mxu0 %v1646
    %1751 = vmatpush1.bf16.msra.mxu0 %v1645
    %1752 = vmatprep.subr.bf16.mxu0 %v1642
    %1753 = vmatpush1.bf16.msra.mxu0 %v1641
    %1754 = vmatprep.subr.bf16.mxu0 %v1638
    %1755 = vmatpush1.bf16.msra.mxu0 %v1637
    %1756 = vmatprep.subr.bf16.mxu0 0
    %1757 = vmatpush2.bf16.msra.mxu0 0
    %1758 = vmatprep.subr.bf16.mxu0 0
    %1759 = vmatpush2.bf16.msra.mxu0 0
    %1760 = vmatprep.subr.bf16.mxu0 0
    %1761 = vmatpush2.bf16.msra.mxu0 0
    %1762 = vmatprep.subr.bf16.mxu0 0
    %1763 = vmatpush2.bf16.msra.mxu0 0
    %1764 = vmatprep.subr.bf16.mxu0 0
    %1765 = vmatpush2.bf16.msra.mxu0 0
    %1766 = vmatprep.subr.bf16.mxu0 0
    %1767 = vmatpush2.bf16.msra.mxu0 0
    %1768 = vmatprep.subr.bf16.mxu0 0
    %1769 = vmatpush2.bf16.msra.mxu0 0
    %1770 = vmatprep.subr.bf16.mxu0 0
    %1771 = vmatpush2.bf16.msra.mxu0 0
    %1772 = vmatprep.mubr.bf16.mxu0 0
    %1773 = vmatmul.mubr.bf16.gmra.mxu0 %v93
    %v1774 = vpop.f32.mrf.mxu0
    %v1775 = vadd.f32 %v1530, %v1774
    %v1776 = vpop.f32.mrf.mxu0
    %v1777 = vadd.f32 %v1534, %v1776
    %v1778 = vpop.f32.mrf.mxu0
    %v1779 = vpop.f32.mrf.mxu0
    %1780 = vdwg.mxu0
    %v1781 = vmax.f32 %v1734, 0.0
    %v1782 = vmax.f32 %v1736, 0.0
    %v1783 = vmax.f32 %v1775, 0.0
    %v1784 = vmax.f32 %v1777, 0.0
    %v1785 = vpack.c.bf16 %v1781, %v1781
    %v1786 = vpack.c.bf16 %v1782, %v1782
    %v1787 = vpack.c.bf16 %v1783, %v1783
    %v1788 = vpack.c.bf16 %v1784, %v1784
    %v1789 = vld [vmem:[#allocation10 + $0x200] sm:$0xf]
    %v1790 = vld [vmem:[#allocation10 + $0x204] sm:$0xf]
    %v1791 = vld [vmem:[#allocation10 + $0x208] sm:$0xf]
    %v1792 = vld [vmem:[#allocation10 + $0x20c] sm:$0xf]
    %v1793 = vld [vmem:[#allocation10 + $0x210] sm:$0xf]
    %v1794 = vld [vmem:[#allocation10 + $0x214] sm:$0xf]
    %v1795 = vld [vmem:[#allocation10 + $0x218] sm:$0xf]
    %v1796 = vld [vmem:[#allocation10 + $0x21c] sm:$0xf]
    %v1797 = vld [vmem:[#allocation10 + $0x220] sm:$0xf]
    %v1798 = vld [vmem:[#allocation10 + $0x224] sm:$0xf]
    %v1799 = vld [vmem:[#allocation10 + $0x228] sm:$0xf]
    %v1800 = vld [vmem:[#allocation10 + $0x22c] sm:$0xf]
    %v1801 = vld [vmem:[#allocation10 + $0x230] sm:$0xf]
    %v1802 = vld [vmem:[#allocation10 + $0x234] sm:$0xf]
    %v1803 = vld [vmem:[#allocation10 + $0x238] sm:$0xf]
    %v1804 = vld [vmem:[#allocation10 + $0x23c] sm:$0xf]
    %v1805 = vld [vmem:[#allocation10 + $0x240] sm:$0xf]
    %v1806 = vld [vmem:[#allocation10 + $0x244] sm:$0xf]
    %v1807 = vld [vmem:[#allocation10 + $0x248] sm:$0xf]
    %v1808 = vld [vmem:[#allocation10 + $0x24c] sm:$0xf]
    %v1809 = vld [vmem:[#allocation10 + $0x250] sm:$0xf]
    %v1810 = vld [vmem:[#allocation10 + $0x254] sm:$0xf]
    %v1811 = vld [vmem:[#allocation10 + $0x258] sm:$0xf]
    %v1812 = vld [vmem:[#allocation10 + $0x25c] sm:$0xf]
    %v1813 = vld [vmem:[#allocation10 + $0x260] sm:$0xf]
    %v1814 = vld [vmem:[#allocation10 + $0x264] sm:$0xf]
    %v1815 = vld [vmem:[#allocation10 + $0x268] sm:$0xf]
    %v1816 = vld [vmem:[#allocation10 + $0x26c] sm:$0xf]
    %v1817 = vld [vmem:[#allocation10 + $0x270] sm:$0xf]
    %v1818 = vld [vmem:[#allocation10 + $0x274] sm:$0xf]
    %v1819 = vld [vmem:[#allocation10 + $0x278] sm:$0xf]
    %v1820 = vld [vmem:[#allocation10 + $0x27c] sm:$0xf]
    %v1821 = vld [vmem:[#allocation10 + $0x280] sm:$0xf]
    %v1822 = vld [vmem:[#allocation10 + $0x284] sm:$0xf]
    %v1823 = vld [vmem:[#allocation10 + $0x288] sm:$0xf]
    %v1824 = vld [vmem:[#allocation10 + $0x28c] sm:$0xf]
    %v1825 = vld [vmem:[#allocation10 + $0x290] sm:$0xf]
    %v1826 = vld [vmem:[#allocation10 + $0x294] sm:$0xf]
    %v1827 = vld [vmem:[#allocation10 + $0x298] sm:$0xf]
    %v1828 = vld [vmem:[#allocation10 + $0x29c] sm:$0xf]
    %v1829 = vld [vmem:[#allocation10 + $0x2a0] sm:$0xf]
    %v1830 = vld [vmem:[#allocation10 + $0x2a4] sm:$0xf]
    %v1831 = vld [vmem:[#allocation10 + $0x2a8] sm:$0xf]
    %v1832 = vld [vmem:[#allocation10 + $0x2ac] sm:$0xf]
    %v1833 = vld [vmem:[#allocation10 + $0x2b0] sm:$0xf]
    %v1834 = vld [vmem:[#allocation10 + $0x2b4] sm:$0xf]
    %v1835 = vld [vmem:[#allocation10 + $0x2b8] sm:$0xf]
    %v1836 = vld [vmem:[#allocation10 + $0x2bc] sm:$0xf]
    %v1837 = vld [vmem:[#allocation10 + $0x2c0] sm:$0xf]
    %v1838 = vld [vmem:[#allocation10 + $0x2c4] sm:$0xf]
    %v1839 = vld [vmem:[#allocation10 + $0x2c8] sm:$0xf]
    %v1840 = vld [vmem:[#allocation10 + $0x2cc] sm:$0xf]
    %v1841 = vld [vmem:[#allocation10 + $0x2d0] sm:$0xf]
    %v1842 = vld [vmem:[#allocation10 + $0x2d4] sm:$0xf]
    %v1843 = vld [vmem:[#allocation10 + $0x2d8] sm:$0xf]
    %v1844 = vld [vmem:[#allocation10 + $0x2dc] sm:$0xf]
    %v1845 = vld [vmem:[#allocation10 + $0x2e0] sm:$0xf]
    %v1846 = vld [vmem:[#allocation10 + $0x2e4] sm:$0xf]
    %v1847 = vld [vmem:[#allocation10 + $0x2e8] sm:$0xf]
    %v1848 = vld [vmem:[#allocation10 + $0x2ec] sm:$0xf]
    %v1849 = vld [vmem:[#allocation10 + $0x2f0] sm:$0xf]
    %v1850 = vld [vmem:[#allocation10 + $0x2f4] sm:$0xf]
    %v1851 = vld [vmem:[#allocation10 + $0x2f8] sm:$0xf]
    %v1852 = vld [vmem:[#allocation10 + $0x2fc] sm:$0xf]
    %v1917 = vunpack.c.l.b16 %v1789
    %v1918 = vunpack.c.l.b16 %v1790
    %v1919 = vunpack.c.l.b16 %v1791
    %v1920 = vunpack.c.l.b16 %v1792
    %v1921 = vunpack.c.l.b16 %v1793
    %v1922 = vunpack.c.l.b16 %v1794
    %v1923 = vunpack.c.l.b16 %v1795
    %v1924 = vunpack.c.l.b16 %v1796
    %v1925 = vunpack.c.l.b16 %v1797
    %v1926 = vunpack.c.l.b16 %v1798
    %v1927 = vunpack.c.l.b16 %v1799
    %v1928 = vunpack.c.l.b16 %v1800
    %v1929 = vunpack.c.l.b16 %v1801
    %v1930 = vunpack.c.l.b16 %v1802
    %v1931 = vunpack.c.l.b16 %v1803
    %v1932 = vunpack.c.l.b16 %v1804
    %v1933 = vunpack.c.l.b16 %v1805
    %v1934 = vunpack.c.l.b16 %v1806
    %v1935 = vunpack.c.l.b16 %v1807
    %v1936 = vunpack.c.l.b16 %v1808
    %v1937 = vunpack.c.l.b16 %v1809
    %v1938 = vunpack.c.l.b16 %v1810
    %v1939 = vunpack.c.l.b16 %v1811
    %v1940 = vunpack.c.l.b16 %v1812
    %v1941 = vunpack.c.l.b16 %v1813
    %v1942 = vunpack.c.l.b16 %v1814
    %v1943 = vunpack.c.l.b16 %v1815
    %v1944 = vunpack.c.l.b16 %v1816
    %v1945 = vunpack.c.l.b16 %v1817
    %v1946 = vunpack.c.l.b16 %v1818
    %v1947 = vunpack.c.l.b16 %v1819
    %v1948 = vunpack.c.l.b16 %v1820
    %v1949 = vunpack.c.l.b16 %v1821
    %v1950 = vunpack.c.l.b16 %v1822
    %v1951 = vunpack.c.l.b16 %v1823
    %v1952 = vunpack.c.l.b16 %v1824
    %v1953 = vunpack.c.l.b16 %v1825
    %v1954 = vunpack.c.l.b16 %v1826
    %v1955 = vunpack.c.l.b16 %v1827
    %v1956 = vunpack.c.l.b16 %v1828
    %v1957 = vunpack.c.l.b16 %v1829
    %v1958 = vunpack.c.l.b16 %v1830
    %v1959 = vunpack.c.l.b16 %v1831
    %v1960 = vunpack.c.l.b16 %v1832
    %v1961 = vunpack.c.l.b16 %v1833
    %v1962 = vunpack.c.l.b16 %v1834
    %v1963 = vunpack.c.l.b16 %v1835
    %v1964 = vunpack.c.l.b16 %v1836
    %v1965 = vunpack.c.l.b16 %v1837
    %v1966 = vunpack.c.l.b16 %v1838
    %v1967 = vunpack.c.l.b16 %v1839
    %v1968 = vunpack.c.l.b16 %v1840
    %v1969 = vunpack.c.l.b16 %v1841
    %v1970 = vunpack.c.l.b16 %v1842
    %v1971 = vunpack.c.l.b16 %v1843
    %v1972 = vunpack.c.l.b16 %v1844
    %v1973 = vunpack.c.l.b16 %v1845
    %v1974 = vunpack.c.l.b16 %v1846
    %v1975 = vunpack.c.l.b16 %v1847
    %v1976 = vunpack.c.l.b16 %v1848
    %v1977 = vunpack.c.l.b16 %v1849
    %v1978 = vunpack.c.l.b16 %v1850
    %v1979 = vunpack.c.l.b16 %v1851
    %v1980 = vunpack.c.l.b16 %v1852
    %v1981 = vpack.c.b16 %v1918, %v1917
    %v1982 = vpack.c.b16 %v1920, %v1919
    %v1983 = vpack.c.b16 %v1922, %v1921
    %v1984 = vpack.c.b16 %v1924, %v1923
    %v1985 = vpack.c.b16 %v1926, %v1925
    %v1986 = vpack.c.b16 %v1928, %v1927
    %v1987 = vpack.c.b16 %v1930, %v1929
    %v1988 = vpack.c.b16 %v1932, %v1931
    %v1989 = vpack.c.b16 %v1934, %v1933
    %v1990 = vpack.c.b16 %v1936, %v1935
    %v1991 = vpack.c.b16 %v1938, %v1937
    %v1992 = vpack.c.b16 %v1940, %v1939
    %v1993 = vpack.c.b16 %v1942, %v1941
    %v1994 = vpack.c.b16 %v1944, %v1943
    %v1995 = vpack.c.b16 %v1946, %v1945
    %v1996 = vpack.c.b16 %v1948, %v1947
    %v1997 = vpack.c.b16 %v1950, %v1949
    %v1998 = vpack.c.b16 %v1952, %v1951
    %v1999 = vpack.c.b16 %v1954, %v1953
    %v2000 = vpack.c.b16 %v1956, %v1955
    %v2001 = vpack.c.b16 %v1958, %v1957
    %v2002 = vpack.c.b16 %v1960, %v1959
    %v2003 = vpack.c.b16 %v1962, %v1961
    %v2004 = vpack.c.b16 %v1964, %v1963
    %v2005 = vpack.c.b16 %v1966, %v1965
    %v2006 = vpack.c.b16 %v1968, %v1967
    %v2007 = vpack.c.b16 %v1970, %v1969
    %v2008 = vpack.c.b16 %v1972, %v1971
    %v2009 = vpack.c.b16 %v1974, %v1973
    %v2010 = vpack.c.b16 %v1976, %v1975
    %v2011 = vpack.c.b16 %v1978, %v1977
    %v2012 = vpack.c.b16 %v1980, %v1979
    %2045 = vmatprep.subr.bf16.mxu0 0
    %2046 = vmatpush1.bf16.msra.mxu0 %v1988
    %2047 = vmatprep.subr.bf16.mxu0 0
    %2048 = vmatpush1.bf16.msra.mxu0 %v1987
    %2049 = vmatprep.subr.bf16.mxu0 0
    %2050 = vmatpush1.bf16.msra.mxu0 %v1986
    %2051 = vmatprep.subr.bf16.mxu0 0
    %2052 = vmatpush1.bf16.msra.mxu0 %v1985
    %2053 = vmatprep.subr.bf16.mxu0 0
    %2054 = vmatpush1.bf16.msra.mxu0 %v1984
    %2055 = vmatprep.subr.bf16.mxu0 0
    %2056 = vmatpush1.bf16.msra.mxu0 %v1983
    %2057 = vmatprep.subr.bf16.mxu0 0
    %2058 = vmatpush1.bf16.msra.mxu0 %v1982
    %2059 = vmatprep.subr.bf16.mxu0 0
    %2060 = vmatpush1.bf16.msra.mxu0 %v1981
    %2061 = vmatprep.subr.bf16.mxu0 0
    %2062 = vmatpush2.bf16.msra.mxu0 %v1996
    %2063 = vmatprep.subr.bf16.mxu0 0
    %2064 = vmatpush2.bf16.msra.mxu0 %v1995
    %2065 = vmatprep.subr.bf16.mxu0 0
    %2066 = vmatpush2.bf16.msra.mxu0 %v1994
    %2067 = vmatprep.subr.bf16.mxu0 0
    %2068 = vmatpush2.bf16.msra.mxu0 %v1993
    %2069 = vmatprep.subr.bf16.mxu0 0
    %2070 = vmatpush2.bf16.msra.mxu0 %v1992
    %2071 = vmatprep.subr.bf16.mxu0 0
    %2072 = vmatpush2.bf16.msra.mxu0 %v1991
    %2073 = vmatprep.subr.bf16.mxu0 0
    %2074 = vmatpush2.bf16.msra.mxu0 %v1990
    %2075 = vmatprep.subr.bf16.mxu0 0
    %2076 = vmatpush2.bf16.msra.mxu0 %v1989
    %2077 = vmatprep.mubr.bf16.mxu0 %v1786
    %2078 = vmatmul.mubr.bf16.gmra.mxu0 %v1785
    %v2079 = vpop.f32.mrf.mxu0
    %v2080 = vadd.f32 0.0, %v2079
    %v2081 = vpop.f32.mrf.mxu0
    %v2082 = vpop.f32.mrf.mxu0
    %v2083 = vpop.f32.mrf.mxu0
    %2084 = vdwg.mxu0
    %2085 = vmatprep.subr.bf16.mxu0 0
    %2086 = vmatpush1.bf16.msra.mxu0 %v2004
    %2087 = vmatprep.subr.bf16.mxu0 0
    %2088 = vmatpush1.bf16.msra.mxu0 %v2003
    %2089 = vmatprep.subr.bf16.mxu0 0
    %2090 = vmatpush1.bf16.msra.mxu0 %v2002
    %2091 = vmatprep.subr.bf16.mxu0 0
    %2092 = vmatpush1.bf16.msra.mxu0 %v2001
    %2093 = vmatprep.subr.bf16.mxu0 0
    %2094 = vmatpush1.bf16.msra.mxu0 %v2000
    %2095 = vmatprep.subr.bf16.mxu0 0
    %2096 = vmatpush1.bf16.msra.mxu0 %v1999
    %2097 = vmatprep.subr.bf16.mxu0 0
    %2098 = vmatpush1.bf16.msra.mxu0 %v1998
    %2099 = vmatprep.subr.bf16.mxu0 0
    %2100 = vmatpush1.bf16.msra.mxu0 %v1997
    %2101 = vmatprep.subr.bf16.mxu0 0
    %2102 = vmatpush2.bf16.msra.mxu0 %v2012
    %2103 = vmatprep.subr.bf16.mxu0 0
    %2104 = vmatpush2.bf16.msra.mxu0 %v2011
    %2105 = vmatprep.subr.bf16.mxu0 0
    %2106 = vmatpush2.bf16.msra.mxu0 %v2010
    %2107 = vmatprep.subr.bf16.mxu0 0
    %2108 = vmatpush2.bf16.msra.mxu0 %v2009
    %2109 = vmatprep.subr.bf16.mxu0 0
    %2110 = vmatpush2.bf16.msra.mxu0 %v2008
    %2111 = vmatprep.subr.bf16.mxu0 0
    %2112 = vmatpush2.bf16.msra.mxu0 %v2007
    %2113 = vmatprep.subr.bf16.mxu0 0
    %2114 = vmatpush2.bf16.msra.mxu0 %v2006
    %2115 = vmatprep.subr.bf16.mxu0 0
    %2116 = vmatpush2.bf16.msra.mxu0 %v2005
    %2117 = vmatprep.mubr.bf16.mxu0 %v1788
    %2118 = vmatmul.mubr.bf16.gmra.mxu0 %v1787
    %v2119 = vpop.f32.mrf.mxu0
    %v2120 = vadd.f32 %v2080, %v2119
    %v2121 = vpop.f32.mrf.mxu0
    %v2122 = vpop.f32.mrf.mxu0
    %v2123 = vpop.f32.mrf.mxu0
    %2124 = vdwg.mxu0
    %v2125 = vadd.f32 %v1480, %v2120
    %v2126 = vld [vmem:[#allocation7 + $0x30] sm:$0xff]
    %v2127 = vld [vmem:[#allocation7 + $0x38] sm:$0xff]
    %v2128 = vld [vmem:[#allocation7 + $0x70] sm:$0xff]
    %v2129 = vld [vmem:[#allocation7 + $0x78] sm:$0xff]
    %v2130 = vld [vmem:[#allocation7 + $0xb0] sm:$0xff]
    %v2131 = vld [vmem:[#allocation7 + $0xb8] sm:$0xff]
    %v2132 = vld [vmem:[#allocation7 + $0xf0] sm:$0xff]
    %v2133 = vld [vmem:[#allocation7 + $0xf8] sm:$0xff]
    %v2134 = vld [vmem:[#allocation7 + $0x130] sm:$0xff]
    %v2135 = vld [vmem:[#allocation7 + $0x138] sm:$0xff]
    %v2136 = vld [vmem:[#allocation7 + $0x170] sm:$0xff]
    %v2137 = vld [vmem:[#allocation7 + $0x178] sm:$0xff]
    %v2138 = vld [vmem:[#allocation7 + $0x1b0] sm:$0xff]
    %v2139 = vld [vmem:[#allocation7 + $0x1b8] sm:$0xff]
    %v2140 = vld [vmem:[#allocation7 + $0x1f0] sm:$0xff]
    %v2141 = vld [vmem:[#allocation7 + $0x1f8] sm:$0xff]
    %v2142 = vld [vmem:[#allocation7 + $0x230] sm:$0xff]
    %v2143 = vld [vmem:[#allocation7 + $0x238] sm:$0xff]
    %v2144 = vld [vmem:[#allocation7 + $0x270] sm:$0xff]
    %v2145 = vld [vmem:[#allocation7 + $0x278] sm:$0xff]
    %v2146 = vld [vmem:[#allocation7 + $0x2b0] sm:$0xff]
    %v2147 = vld [vmem:[#allocation7 + $0x2b8] sm:$0xff]
    %v2148 = vld [vmem:[#allocation7 + $0x2f0] sm:$0xff]
    %v2149 = vld [vmem:[#allocation7 + $0x2f8] sm:$0xff]
    %v2150 = vld [vmem:[#allocation7 + $0x330] sm:$0xff]
    %v2151 = vld [vmem:[#allocation7 + $0x338] sm:$0xff]
    %v2152 = vld [vmem:[#allocation7 + $0x370] sm:$0xff]
    %v2153 = vld [vmem:[#allocation7 + $0x378] sm:$0xff]
    %v2154 = vld [vmem:[#allocation7 + $0x3b0] sm:$0xff]
    %v2155 = vld [vmem:[#allocation7 + $0x3b8] sm:$0xff]
    %v2156 = vld [vmem:[#allocation7 + $0x3f0] sm:$0xff]
    %v2157 = vld [vmem:[#allocation7 + $0x3f8] sm:$0xff]
    %v2158 = vld [vmem:[#allocation8 + $0xc] sm:$0xf]
    %v2160 = vlaneseq
    %v2161 = vshrl.u32 %v2160, 7
    %v2162 = vsub.s32 0, %v2161
    %v2163 = vrot.slane %v2158, %v2162
    %v2164 = vlaneseq
    %v2165 = vshrl.u32 %v2164, 7
    %v2166 = vsub.s32 1, %v2165
    %v2167 = vrot.slane %v2158, %v2166
    %v2168 = vlaneseq
    %v2169 = vshrl.u32 %v2168, 7
    %v2170 = vsub.s32 2, %v2169
    %v2171 = vrot.slane %v2158, %v2170
    %v2172 = vlaneseq
    %v2173 = vshrl.u32 %v2172, 7
    %v2174 = vsub.s32 3, %v2173
    %v2175 = vrot.slane %v2158, %v2174
    %v2212 = vunpack.c.l.b16 %v2126
    %v2213 = vunpack.c.h.b16 %v2126
    %v2214 = vunpack.c.l.b16 %v2127
    %v2215 = vunpack.c.h.b16 %v2127
    %v2216 = vunpack.c.l.b16 %v2128
    %v2217 = vunpack.c.h.b16 %v2128
    %v2218 = vunpack.c.l.b16 %v2129
    %v2219 = vunpack.c.h.b16 %v2129
    %v2220 = vunpack.c.l.b16 %v2130
    %v2221 = vunpack.c.h.b16 %v2130
    %v2222 = vunpack.c.l.b16 %v2131
    %v2223 = vunpack.c.h.b16 %v2131
    %v2224 = vunpack.c.l.b16 %v2132
    %v2225 = vunpack.c.h.b16 %v2132
    %v2226 = vunpack.c.l.b16 %v2133
    %v2227 = vunpack.c.h.b16 %v2133
    %v2228 = vunpack.c.l.b16 %v2134
    %v2229 = vunpack.c.h.b16 %v2134
    %v2230 = vunpack.c.l.b16 %v2135
    %v2231 = vunpack.c.h.b16 %v2135
    %v2232 = vunpack.c.l.b16 %v2136
    %v2233 = vunpack.c.h.b16 %v2136
    %v2234 = vunpack.c.l.b16 %v2137
    %v2235 = vunpack.c.h.b16 %v2137
    %v2236 = vunpack.c.l.b16 %v2138
    %v2237 = vunpack.c.h.b16 %v2138
    %v2238 = vunpack.c.l.b16 %v2139
    %v2239 = vunpack.c.h.b16 %v2139
    %v2240 = vunpack.c.l.b16 %v2140
    %v2241 = vunpack.c.h.b16 %v2140
    %v2242 = vunpack.c.l.b16 %v2141
    %v2243 = vunpack.c.h.b16 %v2141
    %v2244 = vunpack.c.l.b16 %v2142
    %v2245 = vunpack.c.h.b16 %v2142
    %v2246 = vunpack.c.l.b16 %v2143
    %v2247 = vunpack.c.h.b16 %v2143
    %v2248 = vunpack.c.l.b16 %v2144
    %v2249 = vunpack.c.h.b16 %v2144
    %v2250 = vunpack.c.l.b16 %v2145
    %v2251 = vunpack.c.h.b16 %v2145
    %v2252 = vunpack.c.l.b16 %v2146
    %v2253 = vunpack.c.h.b16 %v2146
    %v2254 = vunpack.c.l.b16 %v2147
    %v2255 = vunpack.c.h.b16 %v2147
    %v2256 = vunpack.c.l.b16 %v2148
    %v2257 = vunpack.c.h.b16 %v2148
    %v2258 = vunpack.c.l.b16 %v2149
    %v2259 = vunpack.c.h.b16 %v2149
    %v2260 = vunpack.c.l.b16 %v2150
    %v2261 = vunpack.c.h.b16 %v2150
    %v2262 = vunpack.c.l.b16 %v2151
    %v2263 = vunpack.c.h.b16 %v2151
    %v2264 = vunpack.c.l.b16 %v2152
    %v2265 = vunpack.c.h.b16 %v2152
    %v2266 = vunpack.c.l.b16 %v2153
    %v2267 = vunpack.c.h.b16 %v2153
    %v2268 = vunpack.c.l.b16 %v2154
    %v2269 = vunpack.c.h.b16 %v2154
    %v2270 = vunpack.c.l.b16 %v2155
    %v2271 = vunpack.c.h.b16 %v2155
    %v2272 = vunpack.c.l.b16 %v2156
    %v2273 = vunpack.c.h.b16 %v2156
    %v2274 = vunpack.c.l.b16 %v2157
    %v2275 = vunpack.c.h.b16 %v2157
    %v2276 = vpack.c.b16 %v2216, %v2212
    %v2277 = vpack.c.b16 %v2217, %v2213
    %v2278 = vpack.c.b16 %v2218, %v2214
    %v2279 = vpack.c.b16 %v2219, %v2215
    %v2280 = vpack.c.b16 %v2224, %v2220
    %v2281 = vpack.c.b16 %v2225, %v2221
    %v2282 = vpack.c.b16 %v2226, %v2222
    %v2283 = vpack.c.b16 %v2227, %v2223
    %v2284 = vpack.c.b16 %v2232, %v2228
    %v2285 = vpack.c.b16 %v2233, %v2229
    %v2286 = vpack.c.b16 %v2234, %v2230
    %v2287 = vpack.c.b16 %v2235, %v2231
    %v2288 = vpack.c.b16 %v2240, %v2236
    %v2289 = vpack.c.b16 %v2241, %v2237
    %v2290 = vpack.c.b16 %v2242, %v2238
    %v2291 = vpack.c.b16 %v2243, %v2239
    %v2292 = vpack.c.b16 %v2248, %v2244
    %v2293 = vpack.c.b16 %v2249, %v2245
    %v2294 = vpack.c.b16 %v2250, %v2246
    %v2295 = vpack.c.b16 %v2251, %v2247
    %v2296 = vpack.c.b16 %v2256, %v2252
    %v2297 = vpack.c.b16 %v2257, %v2253
    %v2298 = vpack.c.b16 %v2258, %v2254
    %v2299 = vpack.c.b16 %v2259, %v2255
    %v2300 = vpack.c.b16 %v2264, %v2260
    %v2301 = vpack.c.b16 %v2265, %v2261
    %v2302 = vpack.c.b16 %v2266, %v2262
    %v2303 = vpack.c.b16 %v2267, %v2263
    %v2304 = vpack.c.b16 %v2272, %v2268
    %v2305 = vpack.c.b16 %v2273, %v2269
    %v2306 = vpack.c.b16 %v2274, %v2270
    %v2307 = vpack.c.b16 %v2275, %v2271
    %2340 = vmatprep.subr.bf16.mxu0 %v2305
    %2341 = vmatpush1.bf16.msra.mxu0 %v2304
    %2342 = vmatprep.subr.bf16.mxu0 %v2301
    %2343 = vmatpush1.bf16.msra.mxu0 %v2300
    %2344 = vmatprep.subr.bf16.mxu0 %v2297
    %2345 = vmatpush1.bf16.msra.mxu0 %v2296
    %2346 = vmatprep.subr.bf16.mxu0 %v2293
    %2347 = vmatpush1.bf16.msra.mxu0 %v2292
    %2348 = vmatprep.subr.bf16.mxu0 %v2289
    %2349 = vmatpush1.bf16.msra.mxu0 %v2288
    %2350 = vmatprep.subr.bf16.mxu0 %v2285
    %2351 = vmatpush1.bf16.msra.mxu0 %v2284
    %2352 = vmatprep.subr.bf16.mxu0 %v2281
    %2353 = vmatpush1.bf16.msra.mxu0 %v2280
    %2354 = vmatprep.subr.bf16.mxu0 %v2277
    %2355 = vmatpush1.bf16.msra.mxu0 %v2276
    %2356 = vmatprep.subr.bf16.mxu0 0
    %2357 = vmatpush2.bf16.msra.mxu0 0
    %2358 = vmatprep.subr.bf16.mxu0 0
    %2359 = vmatpush2.bf16.msra.mxu0 0
    %2360 = vmatprep.subr.bf16.mxu0 0
    %2361 = vmatpush2.bf16.msra.mxu0 0
    %2362 = vmatprep.subr.bf16.mxu0 0
    %2363 = vmatpush2.bf16.msra.mxu0 0
    %2364 = vmatprep.subr.bf16.mxu0 0
    %2365 = vmatpush2.bf16.msra.mxu0 0
    %2366 = vmatprep.subr.bf16.mxu0 0
    %2367 = vmatpush2.bf16.msra.mxu0 0
    %2368 = vmatprep.subr.bf16.mxu0 0
    %2369 = vmatpush2.bf16.msra.mxu0 0
    %2370 = vmatprep.subr.bf16.mxu0 0
    %2371 = vmatpush2.bf16.msra.mxu0 0
    %2372 = vmatprep.mubr.bf16.mxu0 0
    %2373 = vmatmul.mubr.bf16.gmra.mxu0 %v93
    %v2374 = vpop.f32.mrf.mxu0
    %v2375 = vadd.f32 %v2163, %v2374
    %v2376 = vpop.f32.mrf.mxu0
    %v2377 = vadd.f32 %v2167, %v2376
    %v2378 = vpop.f32.mrf.mxu0
    %v2379 = vpop.f32.mrf.mxu0
    %2380 = vdwg.mxu0
    %2381 = vmatprep.subr.bf16.mxu0 %v2307
    %2382 = vmatpush1.bf16.msra.mxu0 %v2306
    %2383 = vmatprep.subr.bf16.mxu0 %v2303
    %2384 = vmatpush1.bf16.msra.mxu0 %v2302
    %2385 = vmatprep.subr.bf16.mxu0 %v2299
    %2386 = vmatpush1.bf16.msra.mxu0 %v2298
    %2387 = vmatprep.subr.bf16.mxu0 %v2295
    %2388 = vmatpush1.bf16.msra.mxu0 %v2294
    %2389 = vmatprep.subr.bf16.mxu0 %v2291
    %2390 = vmatpush1.bf16.msra.mxu0 %v2290
    %2391 = vmatprep.subr.bf16.mxu0 %v2287
    %2392 = vmatpush1.bf16.msra.mxu0 %v2286
    %2393 = vmatprep.subr.bf16.mxu0 %v2283
    %2394 = vmatpush1.bf16.msra.mxu0 %v2282
    %2395 = vmatprep.subr.bf16.mxu0 %v2279
    %2396 = vmatpush1.bf16.msra.mxu0 %v2278
    %2397 = vmatprep.subr.bf16.mxu0 0
    %2398 = vmatpush2.bf16.msra.mxu0 0
    %2399 = vmatprep.subr.bf16.mxu0 0
    %2400 = vmatpush2.bf16.msra.mxu0 0
    %2401 = vmatprep.subr.bf16.mxu0 0
    %2402 = vmatpush2.bf16.msra.mxu0 0
    %2403 = vmatprep.subr.bf16.mxu0 0
    %2404 = vmatpush2.bf16.msra.mxu0 0
    %2405 = vmatprep.subr.bf16.mxu0 0
    %2406 = vmatpush2.bf16.msra.mxu0 0
    %2407 = vmatprep.subr.bf16.mxu0 0
    %2408 = vmatpush2.bf16.msra.mxu0 0
    %2409 = vmatprep.subr.bf16.mxu0 0
    %2410 = vmatpush2.bf16.msra.mxu0 0
    %2411 = vmatprep.subr.bf16.mxu0 0
    %2412 = vmatpush2.bf16.msra.mxu0 0
    %2413 = vmatprep.mubr.bf16.mxu0 0
    %2414 = vmatmul.mubr.bf16.gmra.mxu0 %v93
    %v2415 = vpop.f32.mrf.mxu0
    %v2416 = vadd.f32 %v2171, %v2415
    %v2417 = vpop.f32.mrf.mxu0
    %v2418 = vadd.f32 %v2175, %v2417
    %v2419 = vpop.f32.mrf.mxu0
    %v2420 = vpop.f32.mrf.mxu0
    %2421 = vdwg.mxu0
    %v2422 = vmax.f32 %v2375, 0.0
    %v2423 = vmax.f32 %v2377, 0.0
    %v2424 = vmax.f32 %v2416, 0.0
    %v2425 = vmax.f32 %v2418, 0.0
    %v2426 = vpack.c.bf16 %v2422, %v2422
    %v2427 = vpack.c.bf16 %v2423, %v2423
    %v2428 = vpack.c.bf16 %v2424, %v2424
    %v2429 = vpack.c.bf16 %v2425, %v2425
    %v2430 = vld [vmem:[#allocation10 + $0x300] sm:$0xf]
    %v2431 = vld [vmem:[#allocation10 + $0x304] sm:$0xf]
    %v2432 = vld [vmem:[#allocation10 + $0x308] sm:$0xf]
    %v2433 = vld [vmem:[#allocation10 + $0x30c] sm:$0xf]
    %v2434 = vld [vmem:[#allocation10 + $0x310] sm:$0xf]
    %v2435 = vld [vmem:[#allocation10 + $0x314] sm:$0xf]
    %v2436 = vld [vmem:[#allocation10 + $0x318] sm:$0xf]
    %v2437 = vld [vmem:[#allocation10 + $0x31c] sm:$0xf]
    %v2438 = vld [vmem:[#allocation10 + $0x320] sm:$0xf]
    %v2439 = vld [vmem:[#allocation10 + $0x324] sm:$0xf]
    %v2440 = vld [vmem:[#allocation10 + $0x328] sm:$0xf]
    %v2441 = vld [vmem:[#allocation10 + $0x32c] sm:$0xf]
    %v2442 = vld [vmem:[#allocation10 + $0x330] sm:$0xf]
    %v2443 = vld [vmem:[#allocation10 + $0x334] sm:$0xf]
    %v2444 = vld [vmem:[#allocation10 + $0x338] sm:$0xf]
    %v2445 = vld [vmem:[#allocation10 + $0x33c] sm:$0xf]
    %v2446 = vld [vmem:[#allocation10 + $0x340] sm:$0xf]
    %v2447 = vld [vmem:[#allocation10 + $0x344] sm:$0xf]
    %v2448 = vld [vmem:[#allocation10 + $0x348] sm:$0xf]
    %v2449 = vld [vmem:[#allocation10 + $0x34c] sm:$0xf]
    %v2450 = vld [vmem:[#allocation10 + $0x350] sm:$0xf]
    %v2451 = vld [vmem:[#allocation10 + $0x354] sm:$0xf]
    %v2452 = vld [vmem:[#allocation10 + $0x358] sm:$0xf]
    %v2453 = vld [vmem:[#allocation10 + $0x35c] sm:$0xf]
    %v2454 = vld [vmem:[#allocation10 + $0x360] sm:$0xf]
    %v2455 = vld [vmem:[#allocation10 + $0x364] sm:$0xf]
    %v2456 = vld [vmem:[#allocation10 + $0x368] sm:$0xf]
    %v2457 = vld [vmem:[#allocation10 + $0x36c] sm:$0xf]
    %v2458 = vld [vmem:[#allocation10 + $0x370] sm:$0xf]
    %v2459 = vld [vmem:[#allocation10 + $0x374] sm:$0xf]
    %v2460 = vld [vmem:[#allocation10 + $0x378] sm:$0xf]
    %v2461 = vld [vmem:[#allocation10 + $0x37c] sm:$0xf]
    %v2462 = vld [vmem:[#allocation10 + $0x380] sm:$0xf]
    %v2463 = vld [vmem:[#allocation10 + $0x384] sm:$0xf]
    %v2464 = vld [vmem:[#allocation10 + $0x388] sm:$0xf]
    %v2465 = vld [vmem:[#allocation10 + $0x38c] sm:$0xf]
    %v2466 = vld [vmem:[#allocation10 + $0x390] sm:$0xf]
    %v2467 = vld [vmem:[#allocation10 + $0x394] sm:$0xf]
    %v2468 = vld [vmem:[#allocation10 + $0x398] sm:$0xf]
    %v2469 = vld [vmem:[#allocation10 + $0x39c] sm:$0xf]
    %v2470 = vld [vmem:[#allocation10 + $0x3a0] sm:$0xf]
    %v2471 = vld [vmem:[#allocation10 + $0x3a4] sm:$0xf]
    %v2472 = vld [vmem:[#allocation10 + $0x3a8] sm:$0xf]
    %v2473 = vld [vmem:[#allocation10 + $0x3ac] sm:$0xf]
    %v2474 = vld [vmem:[#allocation10 + $0x3b0] sm:$0xf]
    %v2475 = vld [vmem:[#allocation10 + $0x3b4] sm:$0xf]
    %v2476 = vld [vmem:[#allocation10 + $0x3b8] sm:$0xf]
    %v2477 = vld [vmem:[#allocation10 + $0x3bc] sm:$0xf]
    %v2478 = vld [vmem:[#allocation10 + $0x3c0] sm:$0xf]
    %v2479 = vld [vmem:[#allocation10 + $0x3c4] sm:$0xf]
    %v2480 = vld [vmem:[#allocation10 + $0x3c8] sm:$0xf]
    %v2481 = vld [vmem:[#allocation10 + $0x3cc] sm:$0xf]
    %v2482 = vld [vmem:[#allocation10 + $0x3d0] sm:$0xf]
    %v2483 = vld [vmem:[#allocation10 + $0x3d4] sm:$0xf]
    %v2484 = vld [vmem:[#allocation10 + $0x3d8] sm:$0xf]
    %v2485 = vld [vmem:[#allocation10 + $0x3dc] sm:$0xf]
    %v2486 = vld [vmem:[#allocation10 + $0x3e0] sm:$0xf]
    %v2487 = vld [vmem:[#allocation10 + $0x3e4] sm:$0xf]
    %v2488 = vld [vmem:[#allocation10 + $0x3e8] sm:$0xf]
    %v2489 = vld [vmem:[#allocation10 + $0x3ec] sm:$0xf]
    %v2490 = vld [vmem:[#allocation10 + $0x3f0] sm:$0xf]
    %v2491 = vld [vmem:[#allocation10 + $0x3f4] sm:$0xf]
    %v2492 = vld [vmem:[#allocation10 + $0x3f8] sm:$0xf]
    %v2493 = vld [vmem:[#allocation10 + $0x3fc] sm:$0xf]
    %v2558 = vunpack.c.l.b16 %v2430
    %v2559 = vunpack.c.l.b16 %v2431
    %v2560 = vunpack.c.l.b16 %v2432
    %v2561 = vunpack.c.l.b16 %v2433
    %v2562 = vunpack.c.l.b16 %v2434
    %v2563 = vunpack.c.l.b16 %v2435
    %v2564 = vunpack.c.l.b16 %v2436
    %v2565 = vunpack.c.l.b16 %v2437
    %v2566 = vunpack.c.l.b16 %v2438
    %v2567 = vunpack.c.l.b16 %v2439
    %v2568 = vunpack.c.l.b16 %v2440
    %v2569 = vunpack.c.l.b16 %v2441
    %v2570 = vunpack.c.l.b16 %v2442
    %v2571 = vunpack.c.l.b16 %v2443
    %v2572 = vunpack.c.l.b16 %v2444
    %v2573 = vunpack.c.l.b16 %v2445
    %v2574 = vunpack.c.l.b16 %v2446
    %v2575 = vunpack.c.l.b16 %v2447
    %v2576 = vunpack.c.l.b16 %v2448
    %v2577 = vunpack.c.l.b16 %v2449
    %v2578 = vunpack.c.l.b16 %v2450
    %v2579 = vunpack.c.l.b16 %v2451
    %v2580 = vunpack.c.l.b16 %v2452
    %v2581 = vunpack.c.l.b16 %v2453
    %v2582 = vunpack.c.l.b16 %v2454
    %v2583 = vunpack.c.l.b16 %v2455
    %v2584 = vunpack.c.l.b16 %v2456
    %v2585 = vunpack.c.l.b16 %v2457
    %v2586 = vunpack.c.l.b16 %v2458
    %v2587 = vunpack.c.l.b16 %v2459
    %v2588 = vunpack.c.l.b16 %v2460
    %v2589 = vunpack.c.l.b16 %v2461
    %v2590 = vunpack.c.l.b16 %v2462
    %v2591 = vunpack.c.l.b16 %v2463
    %v2592 = vunpack.c.l.b16 %v2464
    %v2593 = vunpack.c.l.b16 %v2465
    %v2594 = vunpack.c.l.b16 %v2466
    %v2595 = vunpack.c.l.b16 %v2467
    %v2596 = vunpack.c.l.b16 %v2468
    %v2597 = vunpack.c.l.b16 %v2469
    %v2598 = vunpack.c.l.b16 %v2470
    %v2599 = vunpack.c.l.b16 %v2471
    %v2600 = vunpack.c.l.b16 %v2472
    %v2601 = vunpack.c.l.b16 %v2473
    %v2602 = vunpack.c.l.b16 %v2474
    %v2603 = vunpack.c.l.b16 %v2475
    %v2604 = vunpack.c.l.b16 %v2476
    %v2605 = vunpack.c.l.b16 %v2477
    %v2606 = vunpack.c.l.b16 %v2478
    %v2607 = vunpack.c.l.b16 %v2479
    %v2608 = vunpack.c.l.b16 %v2480
    %v2609 = vunpack.c.l.b16 %v2481
    %v2610 = vunpack.c.l.b16 %v2482
    %v2611 = vunpack.c.l.b16 %v2483
    %v2612 = vunpack.c.l.b16 %v2484
    %v2613 = vunpack.c.l.b16 %v2485
    %v2614 = vunpack.c.l.b16 %v2486
    %v2615 = vunpack.c.l.b16 %v2487
    %v2616 = vunpack.c.l.b16 %v2488
    %v2617 = vunpack.c.l.b16 %v2489
    %v2618 = vunpack.c.l.b16 %v2490
    %v2619 = vunpack.c.l.b16 %v2491
    %v2620 = vunpack.c.l.b16 %v2492
    %v2621 = vunpack.c.l.b16 %v2493
    %v2622 = vpack.c.b16 %v2559, %v2558
    %v2623 = vpack.c.b16 %v2561, %v2560
    %v2624 = vpack.c.b16 %v2563, %v2562
    %v2625 = vpack.c.b16 %v2565, %v2564
    %v2626 = vpack.c.b16 %v2567, %v2566
    %v2627 = vpack.c.b16 %v2569, %v2568
    %v2628 = vpack.c.b16 %v2571, %v2570
    %v2629 = vpack.c.b16 %v2573, %v2572
    %v2630 = vpack.c.b16 %v2575, %v2574
    %v2631 = vpack.c.b16 %v2577, %v2576
    %v2632 = vpack.c.b16 %v2579, %v2578
    %v2633 = vpack.c.b16 %v2581, %v2580
    %v2634 = vpack.c.b16 %v2583, %v2582
    %v2635 = vpack.c.b16 %v2585, %v2584
    %v2636 = vpack.c.b16 %v2587, %v2586
    %v2637 = vpack.c.b16 %v2589, %v2588
    %v2638 = vpack.c.b16 %v2591, %v2590
    %v2639 = vpack.c.b16 %v2593, %v2592
    %v2640 = vpack.c.b16 %v2595, %v2594
    %v2641 = vpack.c.b16 %v2597, %v2596
    %v2642 = vpack.c.b16 %v2599, %v2598
    %v2643 = vpack.c.b16 %v2601, %v2600
    %v2644 = vpack.c.b16 %v2603, %v2602
    %v2645 = vpack.c.b16 %v2605, %v2604
    %v2646 = vpack.c.b16 %v2607, %v2606
    %v2647 = vpack.c.b16 %v2609, %v2608
    %v2648 = vpack.c.b16 %v2611, %v2610
    %v2649 = vpack.c.b16 %v2613, %v2612
    %v2650 = vpack.c.b16 %v2615, %v2614
    %v2651 = vpack.c.b16 %v2617, %v2616
    %v2652 = vpack.c.b16 %v2619, %v2618
    %v2653 = vpack.c.b16 %v2621, %v2620
    %2686 = vmatprep.subr.bf16.mxu0 0
    %2687 = vmatpush1.bf16.msra.mxu0 %v2629
    %2688 = vmatprep.subr.bf16.mxu0 0
    %2689 = vmatpush1.bf16.msra.mxu0 %v2628
    %2690 = vmatprep.subr.bf16.mxu0 0
    %2691 = vmatpush1.bf16.msra.mxu0 %v2627
    %2692 = vmatprep.subr.bf16.mxu0 0
    %2693 = vmatpush1.bf16.msra.mxu0 %v2626
    %2694 = vmatprep.subr.bf16.mxu0 0
    %2695 = vmatpush1.bf16.msra.mxu0 %v2625
    %2696 = vmatprep.subr.bf16.mxu0 0
    %2697 = vmatpush1.bf16.msra.mxu0 %v2624
    %2698 = vmatprep.subr.bf16.mxu0 0
    %2699 = vmatpush1.bf16.msra.mxu0 %v2623
    %2700 = vmatprep.subr.bf16.mxu0 0
    %2701 = vmatpush1.bf16.msra.mxu0 %v2622
    %2702 = vmatprep.subr.bf16.mxu0 0
    %2703 = vmatpush2.bf16.msra.mxu0 %v2637
    %2704 = vmatprep.subr.bf16.mxu0 0
    %2705 = vmatpush2.bf16.msra.mxu0 %v2636
    %2706 = vmatprep.subr.bf16.mxu0 0
    %2707 = vmatpush2.bf16.msra.mxu0 %v2635
    %2708 = vmatprep.subr.bf16.mxu0 0
    %2709 = vmatpush2.bf16.msra.mxu0 %v2634
    %2710 = vmatprep.subr.bf16.mxu0 0
    %2711 = vmatpush2.bf16.msra.mxu0 %v2633
    %2712 = vmatprep.subr.bf16.mxu0 0
    %2713 = vmatpush2.bf16.msra.mxu0 %v2632
    %2714 = vmatprep.subr.bf16.mxu0 0
    %2715 = vmatpush2.bf16.msra.mxu0 %v2631
    %2716 = vmatprep.subr.bf16.mxu0 0
    %2717 = vmatpush2.bf16.msra.mxu0 %v2630
    %2718 = vmatprep.mubr.bf16.mxu0 %v2427
    %2719 = vmatmul.mubr.bf16.gmra.mxu0 %v2426
    %v2720 = vpop.f32.mrf.mxu0
    %v2721 = vadd.f32 0.0, %v2720
    %v2722 = vpop.f32.mrf.mxu0
    %v2723 = vpop.f32.mrf.mxu0
    %v2724 = vpop.f32.mrf.mxu0
    %2725 = vdwg.mxu0
    %2726 = vmatprep.subr.bf16.mxu0 0
    %2727 = vmatpush1.bf16.msra.mxu0 %v2645
    %2728 = vmatprep.subr.bf16.mxu0 0
    %2729 = vmatpush1.bf16.msra.mxu0 %v2644
    %2730 = vmatprep.subr.bf16.mxu0 0
    %2731 = vmatpush1.bf16.msra.mxu0 %v2643
    %2732 = vmatprep.subr.bf16.mxu0 0
    %2733 = vmatpush1.bf16.msra.mxu0 %v2642
    %2734 = vmatprep.subr.bf16.mxu0 0
    %2735 = vmatpush1.bf16.msra.mxu0 %v2641
    %2736 = vmatprep.subr.bf16.mxu0 0
    %2737 = vmatpush1.bf16.msra.mxu0 %v2640
    %2738 = vmatprep.subr.bf16.mxu0 0
    %2739 = vmatpush1.bf16.msra.mxu0 %v2639
    %2740 = vmatprep.subr.bf16.mxu0 0
    %2741 = vmatpush1.bf16.msra.mxu0 %v2638
    %2742 = vmatprep.subr.bf16.mxu0 0
    %2743 = vmatpush2.bf16.msra.mxu0 %v2653
    %2744 = vmatprep.subr.bf16.mxu0 0
    %2745 = vmatpush2.bf16.msra.mxu0 %v2652
    %2746 = vmatprep.subr.bf16.mxu0 0
    %2747 = vmatpush2.bf16.msra.mxu0 %v2651
    %2748 = vmatprep.subr.bf16.mxu0 0
    %2749 = vmatpush2.bf16.msra.mxu0 %v2650
    %2750 = vmatprep.subr.bf16.mxu0 0
    %2751 = vmatpush2.bf16.msra.mxu0 %v2649
    %2752 = vmatprep.subr.bf16.mxu0 0
    %2753 = vmatpush2.bf16.msra.mxu0 %v2648
    %2754 = vmatprep.subr.bf16.mxu0 0
    %2755 = vmatpush2.bf16.msra.mxu0 %v2647
    %2756 = vmatprep.subr.bf16.mxu0 0
    %2757 = vmatpush2.bf16.msra.mxu0 %v2646
    %2758 = vmatprep.mubr.bf16.mxu0 %v2429
    %2759 = vmatmul.mubr.bf16.gmra.mxu0 %v2428
    %v2760 = vpop.f32.mrf.mxu0
    %v2761 = vadd.f32 %v2721, %v2760
    %v2762 = vpop.f32.mrf.mxu0
    %v2763 = vpop.f32.mrf.mxu0
    %v2764 = vpop.f32.mrf.mxu0
    %2765 = vdwg.mxu0
    %v2766 = vadd.f32 %v2125, %v2761
    %v2767 = vadd.f32 %v200, %v2766
    %v2768 = vld [vmem:[%s6] sm:$0x1]
    %v2770 = vlaneseq
    %v2771 = vshrl.u32 %v2770, 7
    %v2772 = vsub.s32 0, %v2771
    %v2773 = vrot.slane %v2768, %v2772
    %v2775 = vadd.f32 %v2767, %v2773
    %2776 = vst [vmem:[#allocation11] sm:$0xff] %v2775
    // Predicated region
    $region50: #{tpu_custom_call.1} parent=1 // pred_check
      _
    $region51: #{tpu_custom_call.1} parent=1 // pred_check_branch
      %2778 = sbr.rel (0) target = $region53
    $region52: #{tpu_custom_call.1} parent=1 // pred_region
      %s2780 = ssub.s32 128, 128
      %2781 = vsyncadd [#allocation4], %s2780
      %s2783 = sshll.u32 [#allocation11], 4
      %s2784 = int_to_ptr.vmem [resolvable:$true] %s2783
      %2786 = dma.vmem_to_hbm [thread:$0]  %s2784, 128, %s7, [#allocation4]
    $region53: #{tpu_custom_call.1} parent=1 // pred_fallthru
      _
    // Predicated region
    $region54: #{tpu_custom_call.1} parent=1 // pred_check
      _
    $region55: #{tpu_custom_call.1} parent=1 // pred_check_branch
      %2788 = sbr.rel (0) target = $region57
    $region56: #{tpu_custom_call.1} parent=1 // pred_region
      %2789 = dma.done [#allocation4], 128
    $region57: #{tpu_custom_call.1} parent=1 // pred_fallthru
      _
    %2790 = vsyncpa [#allocation3], 1
    %2791 = vsyncpa [#allocation6], 1
    %2792 = vsyncpa [#allocation9], 1
    %2793 = vsyncpa [#allocation4], 1

</llo_original>
